<compile_context>
chip_gen: v7x
topology: tpu7x:2x2x1
jax: 0.10.0
libtpu: 0.0.40
codegen_flags: <defaults>
</compile_context>

<pallas_src>
import jax
import jax.numpy as jnp
from jax.experimental import pallas as pl
from jax.experimental.pallas import tpu as pltpu

GENSEN_OUT = 2048       # SentimentAnalysisBaseline.gensen_out_size
NUM_CLASSES = 3
NUM_HEADS = 4           # Iseen, Iliked, Rseen, Rliked
OUT_W = NUM_CLASSES * NUM_HEADS   # 12 fused output columns


def _sentiment_kernel(x_ref, sender_ref, mask_ref, w_ref, wsb_ref, out_ref):
    """One conversation per grid step.

    x_ref:      (1, L, 2048)  sentence representations (compute dtype)
    sender_ref: (1, L, 1)     sender flags (f32)
    mask_ref:   (1, L, 1)     1.0 where utterance length > 0, else 0.0 (f32)
    w_ref:      (2048, 12)    fused head weights, column = class*4 + head
    wsb_ref:    (2, 12)       row 0: sender-feature weights, row 1: biases (f32)
    out_ref:    (1, 1, 12)    per-head log-probs, column = class*4 + head
    """
    x = x_ref[0]                                    # (L, 2048)
    mask = mask_ref[0].astype(x.dtype)              # (L, 1)
    sender = sender_ref[0]                          # (L, 1), f32

    # Zero padded utterances (torch pads their representations with zeros).
    xm = x * mask

    # Fused 4-head linear: one K=2048-aligned MXU matmul ...
    logits = jnp.dot(xm, w_ref[...], preferred_element_type=jnp.float32)   # (L, 12)
    # ... plus the sender feature as a rank-1 VPU update, and the bias.
    logits = logits + sender * wsb_ref[0:1, :] + wsb_ref[1:2, :]

    # log_softmax over the 3 classes of each head.  Columns are class-major,
    # so each class is a contiguous 4-lane slice: VPU max/add, EUP exp/log.
    c0 = logits[:, 0:4]
    c1 = logits[:, 4:8]
    c2 = logits[:, 8:12]
    m1 = jnp.maximum(jnp.maximum(c0, c1), c2)
    lse1 = m1 + jnp.log(jnp.exp(c0 - m1) + jnp.exp(c1 - m1) + jnp.exp(c2 - m1))

    # Mean over the conversation axis (torch.mean over max_conversation_length).
    inv_l = 1.0 / x.shape[0]
    p0 = jnp.sum(c0 - lse1, axis=0, keepdims=True) * inv_l    # (1, 4)
    p1 = jnp.sum(c1 - lse1, axis=0, keepdims=True) * inv_l
    p2 = jnp.sum(c2 - lse1, axis=0, keepdims=True) * inv_l

    # Second log_softmax (pool='mean' branch).
    m2 = jnp.maximum(jnp.maximum(p0, p1), p2)
    lse2 = m2 + jnp.log(jnp.exp(p0 - m2) + jnp.exp(p1 - m2) + jnp.exp(p2 - m2))

    # Single lane-dense 12-wide output row per conversation.
    out_ref[0, :, 0:4] = p0 - lse2
    out_ref[0, :, 4:8] = p1 - lse2
    out_ref[0, :, 8:12] = p2 - lse2


def sentiment_forward(sentence_reps, senders, lengths, weights, biases,
                      compute_dtype=jnp.float32):
    """pool='mean' forward.

    sentence_reps: (B, L, 2048) GenSen per-utterance representations
    senders:       (B, L)       sender flags
    lengths:       (B, L) int32 utterance lengths (<=0 rows are zero-padded)
    weights:       (4, 2049, 3) per-head nn.Linear weights (feature-major,
                                last feature row = sender flag)
    biases:        (4, 1, 3)
    compute_dtype: dtype of the matmul inputs (use jnp.bfloat16 on v6e/v7x;
                   all softmax/mean math stays f32).
    returns tuple of 4 arrays, each (B, 3) of log-probabilities
            (Iseen, Iliked, Rseen, Rliked).
    """
    B, L, D = sentence_reps.shape
    assert D == GENSEN_OUT
    assert weights.shape == (NUM_HEADS, D + 1, NUM_CLASSES)

    # Restructure the (tiny) parameters once: fused class-major weight matrix
    # (column = class*NUM_HEADS + head) + packed sender-weight / bias rows.
    w_rep = weights[:, :D, :]                                          # (4, 2048, 3)
    w_all = jnp.transpose(w_rep, (1, 2, 0)).reshape(D, OUT_W)          # (2048, 12)
    w_snd = jnp.transpose(weights[:, D, :], (1, 0)).reshape(1, OUT_W)  # (1, 12)
    b_all = jnp.transpose(biases[:, 0, :], (1, 0)).reshape(1, OUT_W)   # (1, 12)
    wsb = jnp.concatenate([w_snd, b_all], axis=0).astype(jnp.float32)  # (2, 12)

    x = sentence_reps.astype(compute_dtype)
    w_all = w_all.astype(compute_dtype)
    sender_col = senders.astype(jnp.float32)[..., None]                # (B, L, 1)
    mask_col = (lengths > 0).astype(jnp.float32)[..., None]            # (B, L, 1)

    out = pl.pallas_call(
        _sentiment_kernel,
        out_shape=jax.ShapeDtypeStruct((B, 1, OUT_W), jnp.float32),
        grid=(B,),
        in_specs=[
            pl.BlockSpec((1, L, D), lambda b: (b, 0, 0)),      # reps
            pl.BlockSpec((1, L, 1), lambda b: (b, 0, 0)),      # sender flag
            pl.BlockSpec((1, L, 1), lambda b: (b, 0, 0)),      # length mask
            pl.BlockSpec((D, OUT_W), lambda b: (0, 0)),        # fused weights
            pl.BlockSpec((2, OUT_W), lambda b: (0, 0)),        # sender w + bias
        ],
        out_specs=pl.BlockSpec((1, 1, OUT_W), lambda b: (b, 0, 0)),
        compiler_params=pltpu.CompilerParams(
            dimension_semantics=("parallel",)),                # v7x: 2 TCs
    )(x, sender_col, mask_col, w_all, wsb)

    out = out.reshape(B, NUM_CLASSES, NUM_HEADS)               # [b, class, head]
    return tuple(out[:, :, h] for h in range(NUM_HEADS))


if __name__ == "__main__":
    key = jax.random.PRNGKey(0)
    B, L = 2, 8                      # batch_size, max_conversation_length
    F = GENSEN_OUT + 1               # +1 sender feature

    k1, k2, k3, k4, k5 = jax.random.split(key, 5)
    sentence_reps = jax.random.normal(k1, (B, L, GENSEN_OUT), dtype=jnp.float32)
    senders = jax.random.bernoulli(k2, 0.5, (B, L)).astype(jnp.float32) * 2.0 - 1.0
    lengths = jax.random.randint(k3, (B, L), 0, 12)   # includes some zero-length pads

    # Deterministic nn.Linear-style init: U(-1/sqrt(fan_in), 1/sqrt(fan_in)).
    bound = 1.0 / jnp.sqrt(jnp.float32(F))
    weights = jax.random.uniform(k4, (NUM_HEADS, F, NUM_CLASSES),
                                 minval=-bound, maxval=bound, dtype=jnp.float32)
    biases = jax.random.uniform(k5, (NUM_HEADS, 1, NUM_CLASSES),
                                minval=-bound, maxval=bound, dtype=jnp.float32)

    out = jax.block_until_ready(
        sentiment_forward(sentence_reps, senders, lengths, weights, biases))

    # Pure-JAX reference (same math as the torch forward, pool='mean').
    mask = (lengths > 0).astype(jnp.float32)[..., None]
    x_ref = jnp.concatenate([sentence_reps * mask, senders[..., None]], axis=-1)
    refs = []
    for h in range(NUM_HEADS):
        logits = jnp.dot(x_ref, weights[h],
                         precision=jax.lax.Precision.HIGHEST) + biases[h][0]
        ls1 = jax.nn.log_softmax(logits, axis=-1)
        refs.append(jax.nn.log_softmax(jnp.mean(ls1, axis=1), axis=-1))

    for h in range(NUM_HEADS):
        assert jnp.allclose(out[h], refs[h], atol=1e-4), f"head {h} mismatch (f32)"

    # bf16 matmul-input path (recommended on v6e / v7x); softmax math stays f32.
    out_bf16 = jax.block_until_ready(
        sentiment_forward(sentence_reps, senders, lengths, weights, biases,
                          compute_dtype=jnp.bfloat16))
    for h in range(NUM_HEADS):
        assert jnp.allclose(out_bf16[h], refs[h], atol=1e-1), f"head {h} mismatch (bf16)"

    print("KERNEL_OK")
</pallas_src>

<mosaic_0001>
module attributes {stable_mosaic.version = 11 : i64} {
  func.func @_sentiment_kernel(%arg0: i32, %arg1: memref<1x8x2048xf32, #tpu.memory_space<vmem>>, %arg2: memref<1x8x1xf32, #tpu.memory_space<vmem>>, %arg3: memref<1x8x1xf32, #tpu.memory_space<vmem>>, %arg4: memref<2048x12xf32, #tpu.memory_space<vmem>>, %arg5: memref<2x12xf32, #tpu.memory_space<vmem>>, %arg6: memref<1x1x12xf32, #tpu.memory_space<vmem>>) attributes {dimension_semantics = [#tpu.dimension_semantics<parallel>], iteration_bounds = array<i64: 2>, scalar_prefetch = 0 : i64, scratch_operands = 0 : i64, tpu.core_type = #tpu.core_type<tc>, window_params = [{transform_indices = @transform_0, window_bounds = array<i64: 1, 8, 2048>}, {transform_indices = @transform_1, window_bounds = array<i64: 1, 8, 1>}, {transform_indices = @transform_2, window_bounds = array<i64: 1, 8, 1>}, {pipeline_mode = #tpu.pipeline_mode<synchronous>, transform_indices = @transform_3, window_bounds = array<i64: 2048, 12>}, {pipeline_mode = #tpu.pipeline_mode<synchronous>, transform_indices = @transform_4, window_bounds = array<i64: 2, 12>}, {transform_indices = @transform_5, window_bounds = array<i64: 1, 1, 12>}]} {
    %c0 = arith.constant 0 : index
    %c0_0 = arith.constant 0 : index
    %c0_1 = arith.constant 0 : index
    %0 = vector.load %arg1[%c0, %c0_0, %c0_1] : memref<1x8x2048xf32, #tpu.memory_space<vmem>>, vector<1x8x2048xf32>
    %1 = vector.shape_cast %0 : vector<1x8x2048xf32> to vector<8x2048xf32>
    %c0_2 = arith.constant 0 : index
    %c0_3 = arith.constant 0 : index
    %c0_4 = arith.constant 0 : index
    %2 = vector.load %arg3[%c0_2, %c0_3, %c0_4] : memref<1x8x1xf32, #tpu.memory_space<vmem>>, vector<1x8x1xf32>
    %3 = vector.shape_cast %2 : vector<1x8x1xf32> to vector<8x1xf32>
    %c0_5 = arith.constant 0 : index
    %c0_6 = arith.constant 0 : index
    %c0_7 = arith.constant 0 : index
    %4 = vector.load %arg2[%c0_5, %c0_6, %c0_7] : memref<1x8x1xf32, #tpu.memory_space<vmem>>, vector<1x8x1xf32>
    %5 = vector.shape_cast %4 : vector<1x8x1xf32> to vector<8x1xf32>
    %6 = vector.broadcast %3 : vector<8x1xf32> to vector<8x2048xf32>
    %7 = arith.mulf %1, %6 : vector<8x2048xf32>
    %c0_8 = arith.constant 0 : index
    %c0_9 = arith.constant 0 : index
    %8 = vector.load %arg4[%c0_8, %c0_9] : memref<2048x12xf32, #tpu.memory_space<vmem>>, vector<2048x12xf32>
    %cst = arith.constant dense<0.000000e+00> : vector<8x12xf32>
    %9 = tpu.matmul %7, %8, %cst {dimension_numbers = #tpu.dot_dimension_numbers<[1], [0], [0], [1], [0, 0, 1, 1], [], []>} : vector<8x2048xf32>, vector<2048x12xf32>, vector<8x12xf32> -> vector<8x12xf32>
    %c0_10 = arith.constant 0 : index
    %c0_11 = arith.constant 0 : index
    %10 = vector.load %arg5[%c0_10, %c0_11] : memref<2x12xf32, #tpu.memory_space<vmem>>, vector<1x12xf32>
    %11 = vector.broadcast %5 : vector<8x1xf32> to vector<8x12xf32>
    %12 = vector.broadcast %10 : vector<1x12xf32> to vector<8x12xf32>
    %13 = arith.mulf %11, %12 : vector<8x12xf32>
    %14 = arith.addf %9, %13 : vector<8x12xf32>
    %c1 = arith.constant 1 : index
    %c0_12 = arith.constant 0 : index
    %15 = vector.load %arg5[%c1, %c0_12] : memref<2x12xf32, #tpu.memory_space<vmem>>, vector<1x12xf32>
    %16 = vector.broadcast %15 : vector<1x12xf32> to vector<8x12xf32>
    %17 = arith.addf %14, %16 : vector<8x12xf32>
    %18 = vector.extract_strided_slice %17 {offsets = [0, 0], sizes = [8, 4], strides = [1, 1]} : vector<8x12xf32> to vector<8x4xf32>
    %19 = vector.extract_strided_slice %17 {offsets = [0, 4], sizes = [8, 4], strides = [1, 1]} : vector<8x12xf32> to vector<8x4xf32>
    %20 = vector.extract_strided_slice %17 {offsets = [0, 8], sizes = [8, 4], strides = [1, 1]} : vector<8x12xf32> to vector<8x4xf32>
    %21 = arith.maximumf %18, %19 : vector<8x4xf32>
    %22 = arith.maximumf %21, %20 : vector<8x4xf32>
    %23 = arith.subf %18, %22 : vector<8x4xf32>
    %24 = math.exp %23 : vector<8x4xf32>
    %25 = arith.subf %19, %22 : vector<8x4xf32>
    %26 = math.exp %25 : vector<8x4xf32>
    %27 = arith.addf %24, %26 : vector<8x4xf32>
    %28 = arith.subf %20, %22 : vector<8x4xf32>
    %29 = math.exp %28 : vector<8x4xf32>
    %30 = arith.addf %27, %29 : vector<8x4xf32>
    %31 = math.log %30 : vector<8x4xf32>
    %32 = arith.addf %22, %31 : vector<8x4xf32>
    %33 = arith.subf %18, %32 : vector<8x4xf32>
    %cst_13 = arith.constant dense<0.000000e+00> : vector<4xf32>
    %34 = vector.multi_reduction <add>, %33, %cst_13 [0] : vector<8x4xf32> to vector<4xf32>
    %35 = vector.shape_cast %34 : vector<4xf32> to vector<1x4xf32>
    %cst_14 = arith.constant 1.250000e-01 : f32
    %36 = vector.broadcast %cst_14 : f32 to vector<1x4xf32>
    %37 = arith.mulf %35, %36 : vector<1x4xf32>
    %38 = arith.subf %19, %32 : vector<8x4xf32>
    %cst_15 = arith.constant dense<0.000000e+00> : vector<4xf32>
    %39 = vector.multi_reduction <add>, %38, %cst_15 [0] : vector<8x4xf32> to vector<4xf32>
    %40 = vector.shape_cast %39 : vector<4xf32> to vector<1x4xf32>
    %cst_16 = arith.constant 1.250000e-01 : f32
    %41 = vector.broadcast %cst_16 : f32 to vector<1x4xf32>
    %42 = arith.mulf %40, %41 : vector<1x4xf32>
    %43 = arith.subf %20, %32 : vector<8x4xf32>
    %cst_17 = arith.constant dense<0.000000e+00> : vector<4xf32>
    %44 = vector.multi_reduction <add>, %43, %cst_17 [0] : vector<8x4xf32> to vector<4xf32>
    %45 = vector.shape_cast %44 : vector<4xf32> to vector<1x4xf32>
    %cst_18 = arith.constant 1.250000e-01 : f32
    %46 = vector.broadcast %cst_18 : f32 to vector<1x4xf32>
    %47 = arith.mulf %45, %46 : vector<1x4xf32>
    %48 = arith.maximumf %37, %42 : vector<1x4xf32>
    %49 = arith.maximumf %48, %47 : vector<1x4xf32>
    %50 = arith.subf %37, %49 : vector<1x4xf32>
    %51 = math.exp %50 : vector<1x4xf32>
    %52 = arith.subf %42, %49 : vector<1x4xf32>
    %53 = math.exp %52 : vector<1x4xf32>
    %54 = arith.addf %51, %53 : vector<1x4xf32>
    %55 = arith.subf %47, %49 : vector<1x4xf32>
    %56 = math.exp %55 : vector<1x4xf32>
    %57 = arith.addf %54, %56 : vector<1x4xf32>
    %58 = math.log %57 : vector<1x4xf32>
    %59 = arith.addf %49, %58 : vector<1x4xf32>
    %60 = arith.subf %37, %59 : vector<1x4xf32>
    %c0_19 = arith.constant 0 : index
    %c0_20 = arith.constant 0 : index
    %c0_21 = arith.constant 0 : index
    %61 = vector.load %arg6[%c0_19, %c0_20, %c0_21] : memref<1x1x12xf32, #tpu.memory_space<vmem>>, vector<1x1x4xf32>
    %62 = vector.shape_cast %61 : vector<1x1x4xf32> to vector<1x4xf32>
    %63 = vector.shape_cast %60 : vector<1x4xf32> to vector<1x1x4xf32>
    tpu.vector_store %arg6[%c0_19, %c0_20, %c0_21], %63 {strides = array<i32>} : memref<1x1x12xf32, #tpu.memory_space<vmem>>, vector<1x1x4xf32>,
    %64 = arith.subf %42, %59 : vector<1x4xf32>
    %c0_22 = arith.constant 0 : index
    %c0_23 = arith.constant 0 : index
    %c4 = arith.constant 4 : index
    %65 = vector.load %arg6[%c0_22, %c0_23, %c4] : memref<1x1x12xf32, #tpu.memory_space<vmem>>, vector<1x1x4xf32>
    %66 = vector.shape_cast %65 : vector<1x1x4xf32> to vector<1x4xf32>
    %67 = vector.shape_cast %64 : vector<1x4xf32> to vector<1x1x4xf32>
    tpu.vector_store %arg6[%c0_22, %c0_23, %c4], %67 {strides = array<i32>} : memref<1x1x12xf32, #tpu.memory_space<vmem>>, vector<1x1x4xf32>,
    %68 = arith.subf %47, %59 : vector<1x4xf32>
    %c0_24 = arith.constant 0 : index
    %c0_25 = arith.constant 0 : index
    %c8 = arith.constant 8 : index
    %69 = vector.load %arg6[%c0_24, %c0_25, %c8] : memref<1x1x12xf32, #tpu.memory_space<vmem>>, vector<1x1x4xf32>
    %70 = vector.shape_cast %69 : vector<1x1x4xf32> to vector<1x4xf32>
    %71 = vector.shape_cast %68 : vector<1x4xf32> to vector<1x1x4xf32>
    tpu.vector_store %arg6[%c0_24, %c0_25, %c8], %71 {strides = array<i32>} : memref<1x1x12xf32, #tpu.memory_space<vmem>>, vector<1x1x4xf32>,
    return
  }
  func.func @transform_0(%arg0: i32) -> (i32, i32, i32) {
    %c0_i32 = arith.constant 0 : i32
    %c0_i32_0 = arith.constant 0 : i32
    %c0_i32_1 = arith.constant 0 : i32
    return %arg0, %c0_i32, %c0_i32_0 : i32, i32, i32
  }
  func.func @transform_1(%arg0: i32) -> (i32, i32, i32) {
    %c0_i32 = arith.constant 0 : i32
    %c0_i32_0 = arith.constant 0 : i32
    %c0_i32_1 = arith.constant 0 : i32
    return %arg0, %c0_i32, %c0_i32_0 : i32, i32, i32
  }
  func.func @transform_2(%arg0: i32) -> (i32, i32, i32) {
    %c0_i32 = arith.constant 0 : i32
    %c0_i32_0 = arith.constant 0 : i32
    %c0_i32_1 = arith.constant 0 : i32
    return %arg0, %c0_i32, %c0_i32_0 : i32, i32, i32
  }
  func.func @transform_3(%arg0: i32) -> (i32, i32) {
    %c0_i32 = arith.constant 0 : i32
    %c0_i32_0 = arith.constant 0 : i32
    %c0_i32_1 = arith.constant 0 : i32
    return %c0_i32, %c0_i32_0 : i32, i32
  }
  func.func @transform_4(%arg0: i32) -> (i32, i32) {
    %c0_i32 = arith.constant 0 : i32
    %c0_i32_0 = arith.constant 0 : i32
    %c0_i32_1 = arith.constant 0 : i32
    return %c0_i32, %c0_i32_0 : i32, i32
  }
  func.func @transform_5(%arg0: i32) -> (i32, i32, i32) {
    %c0_i32 = arith.constant 0 : i32
    %c0_i32_0 = arith.constant 0 : i32
    %c0_i32_1 = arith.constant 0 : i32
    return %arg0, %c0_i32, %c0_i32_0 : i32, i32, i32
  }
}

</mosaic_0001>

<llo_original>
// kernel: tpu_custom_call.1
$region0: #{tpu_custom_call.1}
  #allocation0 [shape = 'u32[]', space=smem, size = 0x4, offset = 0x4, fixed_abs, tag = 'smem constant byte address 0x4 - core index']
  #allocation1 [shape = 'u32[144,128]{1,0:T(1,128)}', space=vmem, size = 0x12000, scoped, tag = 'internal scratch']
  %s0 = inlined_call_operand.vmem [shape: f32[2,8,2048], index: 0, kind: input, shape index: {}]
  %s1 = inlined_call_operand.vmem [shape: f32[2,8,1], index: 1, kind: input, shape index: {}]
  %s2 = inlined_call_operand.vmem [shape: f32[2,8,1], index: 2, kind: input, shape index: {}]
  %s3 = inlined_call_operand.vmem [shape: f32[2048,12], index: 3, kind: input, shape index: {}]
  %s4 = inlined_call_operand.vmem [shape: f32[2,12], index: 4, kind: input, shape index: {}]
  %s5 = inlined_call_operand.hbm [shape: f32[2,1,12], index: 5, kind: output, shape index: {}]
  %s6 = sld [smem:[#allocation0]]
  $region53: #{tpu_custom_call.1} parent=0
    _
  %s8 = ssub.s32 1, %s6
  %s9 = scalar_select 0, %s8, %s6
  $region1: #{tpu_custom_call.1} parent=0
    #allocation2 [shape = 'u8[1024]{0}', space=vmem, size = 0x400, scoped, tag = 'output window, operand 0']
    #allocation3 [shape = 's32[2]{0}', space=sflag, size = 0x8, scoped, tag = 'scoped memory for tpu_custom_call.1']
    %10 = vsyncpa [#allocation3], 0
    %s11 = scalar_lea.sflag [#allocation3], 1
    %12 = vsyncpa %s11, 0
    loop: start=0, step=1, limit=4
    $region2: #{tpu_custom_call.1} parent=1 // loop_pre_header
      _
    $region3: #{tpu_custom_call.1} parent=1 // loop_header
      %s14 = sphi 0, %s18
      %p15 = scmp.ge.s32.totalorder %s14, 4
      %s24 = sphi 0, %s26
      %s27 = sphi 0, %s24
      %s28 = sphi 0, %s27
      %s44 = sphi 0, %s28
      %s50 = sphi 0, %s52
      %s53 = sphi 0, %s50
      %s54 = sphi 0, %s53
      %s70 = sphi 0, %s54
      %s76 = sphi 0, %s78
      %s79 = sphi 0, %s76
      %s80 = sphi 0, %s79
      %s96 = sphi 0, %s80
      %s100 = sphi 0, %s100
      %s102 = sphi 0, %s100
      %s103 = sphi 0, %s102
      %s117 = sphi 0, %s103
      %s121 = sphi 0, %s121
      %s123 = sphi 0, %s121
      %s124 = sphi 0, %s123
      %s138 = sphi 0, %s124
      %s144 = sphi 0, %s146
      %s147 = sphi 0, %s144
      %s148 = sphi 0, %s147
      %s164 = sphi 0, %s148
    $region4: #{tpu_custom_call.1} parent=1 // loop_header_branch
      %17 = sbr.rel (%p15) target = $region8
    $region5: #{tpu_custom_call.1} parent=1 // loop_body
      %s19 = ssub.s32 %s14, 1
      %s20 = ssub.s32 %s14, 2
      %s21 = sadd.s32 %s14, 1
      %s22 = ssub.s32 %s14, %s21
      %p23 = scmp.eq.s32.totalorder %s22, 0
      %s25 = sadd.s32 %s24, 1
      %s26 = scalar_select %p23, %s24, %s25
      %p29 = pneg %p23
      %p30 = scmp.eq.s32.totalorder %s14, 1
      %p31 = por %p29, %p30
      %p32 = scmp.ne.s32.totalorder %s24, %s27
      %p33 = scmp.eq.s32.totalorder %s14, 0
      %p34 = por %p32, %p33
      %p35 = scmp.ne.s32.totalorder %s24, %s27
      %p36 = scmp.eq.s32.totalorder %s19, 1
      %p37 = por %p35, %p36
      %p38 = scmp.ne.s32.totalorder %s27, %s28
      %p39 = scmp.eq.s32.totalorder %s19, 0
      %p40 = por %p38, %p39
      %p41 = scmp.ne.s32.totalorder %s27, %s28
      %p42 = scmp.eq.s32.totalorder %s20, 1
      %p43 = por %p41, %p42
      %p45 = scmp.ne.s32.totalorder %s28, %s44
      %p46 = scmp.eq.s32.totalorder %s20, 0
      %p47 = por %p45, %p46
      %s48 = ssub.s32 %s14, %s21
      %p49 = scmp.eq.s32.totalorder %s48, 0
      %s51 = sadd.s32 %s50, 1
      %s52 = scalar_select %p49, %s50, %s51
      %p55 = pneg %p49
      %p56 = scmp.eq.s32.totalorder %s14, 1
      %p57 = por %p55, %p56
      %p58 = scmp.ne.s32.totalorder %s50, %s53
      %p59 = scmp.eq.s32.totalorder %s14, 0
      %p60 = por %p58, %p59
      %p61 = scmp.ne.s32.totalorder %s50, %s53
      %p62 = scmp.eq.s32.totalorder %s19, 1
      %p63 = por %p61, %p62
      %p64 = scmp.ne.s32.totalorder %s53, %s54
      %p65 = scmp.eq.s32.totalorder %s19, 0
      %p66 = por %p64, %p65
      %p67 = scmp.ne.s32.totalorder %s53, %s54
      %p68 = scmp.eq.s32.totalorder %s20, 1
      %p69 = por %p67, %p68
      %p71 = scmp.ne.s32.totalorder %s54, %s70
      %p72 = scmp.eq.s32.totalorder %s20, 0
      %p73 = por %p71, %p72
      %s74 = ssub.s32 %s14, %s21
      %p75 = scmp.eq.s32.totalorder %s74, 0
      %s77 = sadd.s32 %s76, 1
      %s78 = scalar_select %p75, %s76, %s77
      %p81 = pneg %p75
      %p82 = scmp.eq.s32.totalorder %s14, 1
      %p83 = por %p81, %p82
      %p84 = scmp.ne.s32.totalorder %s76, %s79
      %p85 = scmp.eq.s32.totalorder %s14, 0
      %p86 = por %p84, %p85
      %p87 = scmp.ne.s32.totalorder %s76, %s79
      %p88 = scmp.eq.s32.totalorder %s19, 1
      %p89 = por %p87, %p88
      %p90 = scmp.ne.s32.totalorder %s79, %s80
      %p91 = scmp.eq.s32.totalorder %s19, 0
      %p92 = por %p90, %p91
      %p93 = scmp.ne.s32.totalorder %s79, %s80
      %p94 = scmp.eq.s32.totalorder %s20, 1
      %p95 = por %p93, %p94
      %p97 = scmp.ne.s32.totalorder %s80, %s96
      %p98 = scmp.eq.s32.totalorder %s20, 0
      %p99 = por %p97, %p98
      %s101 = sadd.s32 %s100, 1
      %p104 = scmp.eq.s32.totalorder %s14, 1
      %p105 = scmp.ne.s32.totalorder %s100, %s102
      %p106 = scmp.eq.s32.totalorder %s14, 0
      %p107 = por %p105, %p106
      %p108 = scmp.ne.s32.totalorder %s100, %s102
      %p109 = scmp.eq.s32.totalorder %s19, 1
      %p110 = por %p108, %p109
      %p111 = scmp.ne.s32.totalorder %s102, %s103
      %p112 = scmp.eq.s32.totalorder %s19, 0
      %p113 = por %p111, %p112
      %p114 = scmp.ne.s32.totalorder %s102, %s103
      %p115 = scmp.eq.s32.totalorder %s20, 1
      %p116 = por %p114, %p115
      %p118 = scmp.ne.s32.totalorder %s103, %s117
      %p119 = scmp.eq.s32.totalorder %s20, 0
      %p120 = por %p118, %p119
      %s122 = sadd.s32 %s121, 1
      %p125 = scmp.eq.s32.totalorder %s14, 1
      %p126 = scmp.ne.s32.totalorder %s121, %s123
      %p127 = scmp.eq.s32.totalorder %s14, 0
      %p128 = por %p126, %p127
      %p129 = scmp.ne.s32.totalorder %s121, %s123
      %p130 = scmp.eq.s32.totalorder %s19, 1
      %p131 = por %p129, %p130
      %p132 = scmp.ne.s32.totalorder %s123, %s124
      %p133 = scmp.eq.s32.totalorder %s19, 0
      %p134 = por %p132, %p133
      %p135 = scmp.ne.s32.totalorder %s123, %s124
      %p136 = scmp.eq.s32.totalorder %s20, 1
      %p137 = por %p135, %p136
      %p139 = scmp.ne.s32.totalorder %s124, %s138
      %p140 = scmp.eq.s32.totalorder %s20, 0
      %p141 = por %p139, %p140
      %s142 = ssub.s32 %s14, %s21
      %p143 = scmp.eq.s32.totalorder %s142, 0
      %s145 = sadd.s32 %s144, 1
      %s146 = scalar_select %p143, %s144, %s145
      %p149 = pneg %p143
      %p150 = scmp.eq.s32.totalorder %s14, 1
      %p151 = por %p149, %p150
      %p152 = scmp.ne.s32.totalorder %s144, %s147
      %p153 = scmp.eq.s32.totalorder %s14, 0
      %p154 = por %p152, %p153
      %p155 = scmp.ne.s32.totalorder %s144, %s147
      %p156 = scmp.eq.s32.totalorder %s19, 1
      %p157 = por %p155, %p156
      %p158 = scmp.ne.s32.totalorder %s147, %s148
      %p159 = scmp.eq.s32.totalorder %s19, 0
      %p160 = por %p158, %p159
      %p161 = scmp.ne.s32.totalorder %s147, %s148
      %p162 = scmp.eq.s32.totalorder %s20, 1
      %p163 = por %p161, %p162
      %p165 = scmp.ne.s32.totalorder %s148, %s164
      %p166 = scmp.eq.s32.totalorder %s20, 0
      %p167 = por %p165, %p166
      %p168 = scmp.le.s32.totalorder 1, %s14
      %p169 = scmp.lt.s32.totalorder %s14, 3
      %p170 = pnand %p168, %p169
      %p171 = pneg %p170
      // Predicated region
      $region9: #{tpu_custom_call.1} parent=5 // pred_check
        _
      $region10: #{tpu_custom_call.1} parent=5 // pred_check_branch
        %173 = sbr.rel (%p170) target = $region12
      $region11: #{tpu_custom_call.1} parent=5 // pred_region
        %s174 = ssub.s32 %s14, 1
        // Predicated region
        $region13: #{tpu_custom_call.1} parent=11 // pred_check
          %p175 = pneg %p113
        $region14: #{tpu_custom_call.1} parent=11 // pred_check_branch
          %177 = sbr.rel (%p175) target = $region16
        $region15: #{tpu_custom_call.1} parent=11 // pred_region
          _
        $region16: #{tpu_custom_call.1} parent=11 // pred_fallthru
          _
        // Predicated region
        $region17: #{tpu_custom_call.1} parent=11 // pred_check
          %p178 = pneg %p134
        $region18: #{tpu_custom_call.1} parent=11 // pred_check_branch
          %180 = sbr.rel (%p178) target = $region20
        $region19: #{tpu_custom_call.1} parent=11 // pred_region
          _
        $region20: #{tpu_custom_call.1} parent=11 // pred_fallthru
          _
      $region12: #{tpu_custom_call.1} parent=5 // pred_fallthru
        _
      %p181 = scmp.lt.s32.totalorder %s14, 2
      // Predicated region
      $region21: #{tpu_custom_call.1} parent=5 // pred_check
        %p182 = pneg %p181
      $region22: #{tpu_custom_call.1} parent=5 // pred_check_branch
        %184 = sbr.rel (%p182) target = $region24
      $region23: #{tpu_custom_call.1} parent=5 // pred_region
        // Predicated region
        $region25: #{tpu_custom_call.1} parent=23 // pred_check
          %p185 = pneg %p34
        $region26: #{tpu_custom_call.1} parent=23 // pred_check_branch
          %187 = sbr.rel (%p185) target = $region28
        $region27: #{tpu_custom_call.1} parent=23 // pred_region
          %p188 = scmp.lt.s32.totalorder %s14, 1
          %s189 = scalar_select %p188, %s14, 1
          %s190 = smul.addr %s189, 16
          %s191 = smul.addr %s190, 8
          %s192 = scalar_lea.vmem %s0, %s191
        $region28: #{tpu_custom_call.1} parent=23 // pred_fallthru
          _
        // Predicated region
        $region29: #{tpu_custom_call.1} parent=23 // pred_check
          %p193 = pneg %p60
        $region30: #{tpu_custom_call.1} parent=23 // pred_check_branch
          %195 = sbr.rel (%p193) target = $region32
        $region31: #{tpu_custom_call.1} parent=23 // pred_region
          %p196 = scmp.lt.s32.totalorder %s14, 1
          %s197 = scalar_select %p196, %s14, 1
          %s198 = smul.addr %s197, 8
          %s199 = scalar_lea.vmem %s1, %s198
        $region32: #{tpu_custom_call.1} parent=23 // pred_fallthru
          _
        // Predicated region
        $region33: #{tpu_custom_call.1} parent=23 // pred_check
          %p200 = pneg %p86
        $region34: #{tpu_custom_call.1} parent=23 // pred_check_branch
          %202 = sbr.rel (%p200) target = $region36
        $region35: #{tpu_custom_call.1} parent=23 // pred_region
          %p203 = scmp.lt.s32.totalorder %s14, 1
          %s204 = scalar_select %p203, %s14, 1
          %s205 = smul.addr %s204, 8
          %s206 = scalar_lea.vmem %s2, %s205
        $region36: #{tpu_custom_call.1} parent=23 // pred_fallthru
          _
      $region24: #{tpu_custom_call.1} parent=5 // pred_fallthru
        _
      %p207 = scmp.le.s32.totalorder 1, %s14
      %p208 = scmp.lt.s32.totalorder %s14, 3
      %p209 = pnand %p207, %p208
      %p210 = pneg %p209
      // Predicated region
      $region37: #{tpu_custom_call.1} parent=5 // pred_check
        _
      $region38: #{tpu_custom_call.1} parent=5 // pred_check_branch
        %212 = sbr.rel (%p209) target = $region40
      $region39: #{tpu_custom_call.1} parent=5 // pred_region
        %s213 = ssub.s32 %s14, 1
        %p214 = scmp.lt.s32.totalorder %s19, 1
        %s215 = scalar_select %p214, %s19, 1
        %s216 = smul.addr %s215, 16
        %s217 = smul.addr %s216, 8
        %s218 = scalar_lea.vmem %s0, %s217
        %p219 = pneg %p40
        %p220 = pneg %p37
        %p221 = scmp.lt.s32.totalorder %s19, 1
        %s222 = scalar_select %p221, %s19, 1
        %s223 = smul.addr %s222, 8
        %s224 = scalar_lea.vmem %s1, %s223
        %p225 = pneg %p66
        %p226 = pneg %p63
        %p227 = scmp.lt.s32.totalorder %s19, 1
        %s228 = scalar_select %p227, %s19, 1
        %s229 = smul.addr %s228, 8
        %s230 = scalar_lea.vmem %s2, %s229
        %p231 = pneg %p92
        %p232 = pneg %p89
        %p233 = pneg %p113
        %p234 = pneg %p110
        %p235 = pneg %p134
        %p236 = pneg %p131
        %p237 = pneg %p160
        %p238 = pneg %p157
        %s239 = sand.u32 %s147, 1
        %s240 = scalar_lea.sflag [#allocation3], %s239
        %s241 = sand.u32 %s147, 1
        %s242 = scalar_lea.vmem [#allocation2], %s241
        %p243 = scmp.lt.s32.totalorder %s19, 1
        %s244 = scalar_select %p243, %s19, 1
        %s245 = smul.addr %s244, 16
        %s246 = smul.addr %s245, 8
        %s247 = scalar_lea.vmem %s0, %s246
        %p248 = scmp.lt.s32.totalorder %s19, 1
        %s249 = scalar_select %p248, %s19, 1
        %s250 = smul.addr %s249, 8
        %s251 = scalar_lea.vmem %s1, %s250
        %p252 = scmp.lt.s32.totalorder %s19, 1
        %s253 = scalar_select %p252, %s19, 1
        %s254 = smul.addr %s253, 8
        %s255 = scalar_lea.vmem %s2, %s254
        %v256 = vld [vmem:[%s247] sm:$0xff]
        %v257 = vld [vmem:[%s247 + $0x8] sm:$0xff]
        %v258 = vld [vmem:[%s247 + $0x10] sm:$0xff]
        %v259 = vld [vmem:[%s247 + $0x18] sm:$0xff]
        %v260 = vld [vmem:[%s247 + $0x20] sm:$0xff]
        %v261 = vld [vmem:[%s247 + $0x28] sm:$0xff]
        %v262 = vld [vmem:[%s247 + $0x30] sm:$0xff]
        %v263 = vld [vmem:[%s247 + $0x38] sm:$0xff]
        %v264 = vld [vmem:[%s247 + $0x40] sm:$0xff]
        %v265 = vld [vmem:[%s247 + $0x48] sm:$0xff]
        %v266 = vld [vmem:[%s247 + $0x50] sm:$0xff]
        %v267 = vld [vmem:[%s247 + $0x58] sm:$0xff]
        %v268 = vld [vmem:[%s247 + $0x60] sm:$0xff]
        %v269 = vld [vmem:[%s247 + $0x68] sm:$0xff]
        %v270 = vld [vmem:[%s247 + $0x70] sm:$0xff]
        %v271 = vld [vmem:[%s247 + $0x78] sm:$0xff]
        %v272 = vld [vmem:[%s255] sm:$0xff]
        %v273 = vld [vmem:[%s251] sm:$0xff]
        %275 = vset.pattern.permute.xlu0 0
        %276 = vperm.xlu0 %275, %v272
        %v277 = vpop.permute.xlu0 %276
        %v279 = vmul.f32 %v256, %v277
        %v280 = vmul.f32 %v257, %v277
        %v281 = vmul.f32 %v258, %v277
        %v282 = vmul.f32 %v259, %v277
        %v283 = vmul.f32 %v260, %v277
        %v284 = vmul.f32 %v261, %v277
        %v285 = vmul.f32 %v262, %v277
        %v286 = vmul.f32 %v263, %v277
        %v287 = vmul.f32 %v264, %v277
        %v288 = vmul.f32 %v265, %v277
        %v289 = vmul.f32 %v266, %v277
        %v290 = vmul.f32 %v267, %v277
        %v291 = vmul.f32 %v268, %v277
        %v292 = vmul.f32 %v269, %v277
        %v293 = vmul.f32 %v270, %v277
        %v294 = vmul.f32 %v271, %v277
        %v295 = vld [vmem:[%s3] sm:$0xff]
        %v296 = vld [vmem:[%s3 + $0x8] sm:$0xff]
        %v297 = vld [vmem:[%s3 + $0x10] sm:$0xff]
        %v298 = vld [vmem:[%s3 + $0x18] sm:$0xff]
        %v299 = vld [vmem:[%s3 + $0x20] sm:$0xff]
        %v300 = vld [vmem:[%s3 + $0x28] sm:$0xff]
        %v301 = vld [vmem:[%s3 + $0x30] sm:$0xff]
        %v302 = vld [vmem:[%s3 + $0x38] sm:$0xff]
        %v303 = vld [vmem:[%s3 + $0x40] sm:$0xff]
        %v304 = vld [vmem:[%s3 + $0x48] sm:$0xff]
        %v305 = vld [vmem:[%s3 + $0x50] sm:$0xff]
        %v306 = vld [vmem:[%s3 + $0x58] sm:$0xff]
        %v307 = vld [vmem:[%s3 + $0x60] sm:$0xff]
        %v308 = vld [vmem:[%s3 + $0x68] sm:$0xff]
        %v309 = vld [vmem:[%s3 + $0x70] sm:$0xff]
        %v310 = vld [vmem:[%s3 + $0x78] sm:$0xff]
        %v311 = vld [vmem:[%s3 + $0x80] sm:$0xff]
        %v312 = vld [vmem:[%s3 + $0x88] sm:$0xff]
        %v313 = vld [vmem:[%s3 + $0x90] sm:$0xff]
        %v314 = vld [vmem:[%s3 + $0x98] sm:$0xff]
        %v315 = vld [vmem:[%s3 + $0xa0] sm:$0xff]
        %v316 = vld [vmem:[%s3 + $0xa8] sm:$0xff]
        %v317 = vld [vmem:[%s3 + $0xb0] sm:$0xff]
        %v318 = vld [vmem:[%s3 + $0xb8] sm:$0xff]
        %v319 = vld [vmem:[%s3 + $0xc0] sm:$0xff]
        %v320 = vld [vmem:[%s3 + $0xc8] sm:$0xff]
        %v321 = vld [vmem:[%s3 + $0xd0] sm:$0xff]
        %v322 = vld [vmem:[%s3 + $0xd8] sm:$0xff]
        %v323 = vld [vmem:[%s3 + $0xe0] sm:$0xff]
        %v324 = vld [vmem:[%s3 + $0xe8] sm:$0xff]
        %v325 = vld [vmem:[%s3 + $0xf0] sm:$0xff]
        %v326 = vld [vmem:[%s3 + $0xf8] sm:$0xff]
        %v327 = vld [vmem:[%s3 + $0x100] sm:$0xff]
        %v328 = vld [vmem:[%s3 + $0x108] sm:$0xff]
        %v329 = vld [vmem:[%s3 + $0x110] sm:$0xff]
        %v330 = vld [vmem:[%s3 + $0x118] sm:$0xff]
        %v331 = vld [vmem:[%s3 + $0x120] sm:$0xff]
        %v332 = vld [vmem:[%s3 + $0x128] sm:$0xff]
        %v333 = vld [vmem:[%s3 + $0x130] sm:$0xff]
        %v334 = vld [vmem:[%s3 + $0x138] sm:$0xff]
        %v335 = vld [vmem:[%s3 + $0x140] sm:$0xff]
        %v336 = vld [vmem:[%s3 + $0x148] sm:$0xff]
        %v337 = vld [vmem:[%s3 + $0x150] sm:$0xff]
        %v338 = vld [vmem:[%s3 + $0x158] sm:$0xff]
        %v339 = vld [vmem:[%s3 + $0x160] sm:$0xff]
        %v340 = vld [vmem:[%s3 + $0x168] sm:$0xff]
        %v341 = vld [vmem:[%s3 + $0x170] sm:$0xff]
        %v342 = vld [vmem:[%s3 + $0x178] sm:$0xff]
        %v343 = vld [vmem:[%s3 + $0x180] sm:$0xff]
        %v344 = vld [vmem:[%s3 + $0x188] sm:$0xff]
        %v345 = vld [vmem:[%s3 + $0x190] sm:$0xff]
        %v346 = vld [vmem:[%s3 + $0x198] sm:$0xff]
        %v347 = vld [vmem:[%s3 + $0x1a0] sm:$0xff]
        %v348 = vld [vmem:[%s3 + $0x1a8] sm:$0xff]
        %v349 = vld [vmem:[%s3 + $0x1b0] sm:$0xff]
        %v350 = vld [vmem:[%s3 + $0x1b8] sm:$0xff]
        %v351 = vld [vmem:[%s3 + $0x1c0] sm:$0xff]
        %v352 = vld [vmem:[%s3 + $0x1c8] sm:$0xff]
        %v353 = vld [vmem:[%s3 + $0x1d0] sm:$0xff]
        %v354 = vld [vmem:[%s3 + $0x1d8] sm:$0xff]
        %v355 = vld [vmem:[%s3 + $0x1e0] sm:$0xff]
        %v356 = vld [vmem:[%s3 + $0x1e8] sm:$0xff]
        %v357 = vld [vmem:[%s3 + $0x1f0] sm:$0xff]
        %v358 = vld [vmem:[%s3 + $0x1f8] sm:$0xff]
        %v359 = vld [vmem:[%s3 + $0x200] sm:$0xff]
        %v360 = vld [vmem:[%s3 + $0x208] sm:$0xff]
        %v361 = vld [vmem:[%s3 + $0x210] sm:$0xff]
        %v362 = vld [vmem:[%s3 + $0x218] sm:$0xff]
        %v363 = vld [vmem:[%s3 + $0x220] sm:$0xff]
        %v364 = vld [vmem:[%s3 + $0x228] sm:$0xff]
        %v365 = vld [vmem:[%s3 + $0x230] sm:$0xff]
        %v366 = vld [vmem:[%s3 + $0x238] sm:$0xff]
        %v367 = vld [vmem:[%s3 + $0x240] sm:$0xff]
        %v368 = vld [vmem:[%s3 + $0x248] sm:$0xff]
        %v369 = vld [vmem:[%s3 + $0x250] sm:$0xff]
        %v370 = vld [vmem:[%s3 + $0x258] sm:$0xff]
        %v371 = vld [vmem:[%s3 + $0x260] sm:$0xff]
        %v372 = vld [vmem:[%s3 + $0x268] sm:$0xff]
        %v373 = vld [vmem:[%s3 + $0x270] sm:$0xff]
        %v374 = vld [vmem:[%s3 + $0x278] sm:$0xff]
        %v375 = vld [vmem:[%s3 + $0x280] sm:$0xff]
        %v376 = vld [vmem:[%s3 + $0x288] sm:$0xff]
        %v377 = vld [vmem:[%s3 + $0x290] sm:$0xff]
        %v378 = vld [vmem:[%s3 + $0x298] sm:$0xff]
        %v379 = vld [vmem:[%s3 + $0x2a0] sm:$0xff]
        %v380 = vld [vmem:[%s3 + $0x2a8] sm:$0xff]
        %v381 = vld [vmem:[%s3 + $0x2b0] sm:$0xff]
        %v382 = vld [vmem:[%s3 + $0x2b8] sm:$0xff]
        %v383 = vld [vmem:[%s3 + $0x2c0] sm:$0xff]
        %v384 = vld [vmem:[%s3 + $0x2c8] sm:$0xff]
        %v385 = vld [vmem:[%s3 + $0x2d0] sm:$0xff]
        %v386 = vld [vmem:[%s3 + $0x2d8] sm:$0xff]
        %v387 = vld [vmem:[%s3 + $0x2e0] sm:$0xff]
        %v388 = vld [vmem:[%s3 + $0x2e8] sm:$0xff]
        %v389 = vld [vmem:[%s3 + $0x2f0] sm:$0xff]
        %v390 = vld [vmem:[%s3 + $0x2f8] sm:$0xff]
        %v391 = vld [vmem:[%s3 + $0x300] sm:$0xff]
        %v392 = vld [vmem:[%s3 + $0x308] sm:$0xff]
        %v393 = vld [vmem:[%s3 + $0x310] sm:$0xff]
        %v394 = vld [vmem:[%s3 + $0x318] sm:$0xff]
        %v395 = vld [vmem:[%s3 + $0x320] sm:$0xff]
        %v396 = vld [vmem:[%s3 + $0x328] sm:$0xff]
        %v397 = vld [vmem:[%s3 + $0x330] sm:$0xff]
        %v398 = vld [vmem:[%s3 + $0x338] sm:$0xff]
        %v399 = vld [vmem:[%s3 + $0x340] sm:$0xff]
        %v400 = vld [vmem:[%s3 + $0x348] sm:$0xff]
        %v401 = vld [vmem:[%s3 + $0x350] sm:$0xff]
        %v402 = vld [vmem:[%s3 + $0x358] sm:$0xff]
        %v403 = vld [vmem:[%s3 + $0x360] sm:$0xff]
        %v404 = vld [vmem:[%s3 + $0x368] sm:$0xff]
        %v405 = vld [vmem:[%s3 + $0x370] sm:$0xff]
        %v406 = vld [vmem:[%s3 + $0x378] sm:$0xff]
        %v407 = vld [vmem:[%s3 + $0x380] sm:$0xff]
        %v408 = vld [vmem:[%s3 + $0x388] sm:$0xff]
        %v409 = vld [vmem:[%s3 + $0x390] sm:$0xff]
        %v410 = vld [vmem:[%s3 + $0x398] sm:$0xff]
        %v411 = vld [vmem:[%s3 + $0x3a0] sm:$0xff]
        %v412 = vld [vmem:[%s3 + $0x3a8] sm:$0xff]
        %v413 = vld [vmem:[%s3 + $0x3b0] sm:$0xff]
        %v414 = vld [vmem:[%s3 + $0x3b8] sm:$0xff]
        %v415 = vld [vmem:[%s3 + $0x3c0] sm:$0xff]
        %v416 = vld [vmem:[%s3 + $0x3c8] sm:$0xff]
        %v417 = vld [vmem:[%s3 + $0x3d0] sm:$0xff]
        %v418 = vld [vmem:[%s3 + $0x3d8] sm:$0xff]
        %v419 = vld [vmem:[%s3 + $0x3e0] sm:$0xff]
        %v420 = vld [vmem:[%s3 + $0x3e8] sm:$0xff]
        %v421 = vld [vmem:[%s3 + $0x3f0] sm:$0xff]
        %v422 = vld [vmem:[%s3 + $0x3f8] sm:$0xff]
        %v423 = vld [vmem:[%s3 + $0x400] sm:$0xff]
        %v424 = vld [vmem:[%s3 + $0x408] sm:$0xff]
        %v425 = vld [vmem:[%s3 + $0x410] sm:$0xff]
        %v426 = vld [vmem:[%s3 + $0x418] sm:$0xff]
        %v427 = vld [vmem:[%s3 + $0x420] sm:$0xff]
        %v428 = vld [vmem:[%s3 + $0x428] sm:$0xff]
        %v429 = vld [vmem:[%s3 + $0x430] sm:$0xff]
        %v430 = vld [vmem:[%s3 + $0x438] sm:$0xff]
        %v431 = vld [vmem:[%s3 + $0x440] sm:$0xff]
        %v432 = vld [vmem:[%s3 + $0x448] sm:$0xff]
        %v433 = vld [vmem:[%s3 + $0x450] sm:$0xff]
        %v434 = vld [vmem:[%s3 + $0x458] sm:$0xff]
        %v435 = vld [vmem:[%s3 + $0x460] sm:$0xff]
        %v436 = vld [vmem:[%s3 + $0x468] sm:$0xff]
        %v437 = vld [vmem:[%s3 + $0x470] sm:$0xff]
        %v438 = vld [vmem:[%s3 + $0x478] sm:$0xff]
        %v439 = vld [vmem:[%s3 + $0x480] sm:$0xff]
        %v440 = vld [vmem:[%s3 + $0x488] sm:$0xff]
        %v441 = vld [vmem:[%s3 + $0x490] sm:$0xff]
        %v442 = vld [vmem:[%s3 + $0x498] sm:$0xff]
        %v443 = vld [vmem:[%s3 + $0x4a0] sm:$0xff]
        %v444 = vld [vmem:[%s3 + $0x4a8] sm:$0xff]
        %v445 = vld [vmem:[%s3 + $0x4b0] sm:$0xff]
        %v446 = vld [vmem:[%s3 + $0x4b8] sm:$0xff]
        %v447 = vld [vmem:[%s3 + $0x4c0] sm:$0xff]
        %v448 = vld [vmem:[%s3 + $0x4c8] sm:$0xff]
        %v449 = vld [vmem:[%s3 + $0x4d0] sm:$0xff]
        %v450 = vld [vmem:[%s3 + $0x4d8] sm:$0xff]
        %v451 = vld [vmem:[%s3 + $0x4e0] sm:$0xff]
        %v452 = vld [vmem:[%s3 + $0x4e8] sm:$0xff]
        %v453 = vld [vmem:[%s3 + $0x4f0] sm:$0xff]
        %v454 = vld [vmem:[%s3 + $0x4f8] sm:$0xff]
        %v455 = vld [vmem:[%s3 + $0x500] sm:$0xff]
        %v456 = vld [vmem:[%s3 + $0x508] sm:$0xff]
        %v457 = vld [vmem:[%s3 + $0x510] sm:$0xff]
        %v458 = vld [vmem:[%s3 + $0x518] sm:$0xff]
        %v459 = vld [vmem:[%s3 + $0x520] sm:$0xff]
        %v460 = vld [vmem:[%s3 + $0x528] sm:$0xff]
        %v461 = vld [vmem:[%s3 + $0x530] sm:$0xff]
        %v462 = vld [vmem:[%s3 + $0x538] sm:$0xff]
        %v463 = vld [vmem:[%s3 + $0x540] sm:$0xff]
        %v464 = vld [vmem:[%s3 + $0x548] sm:$0xff]
        %v465 = vld [vmem:[%s3 + $0x550] sm:$0xff]
        %v466 = vld [vmem:[%s3 + $0x558] sm:$0xff]
        %v467 = vld [vmem:[%s3 + $0x560] sm:$0xff]
        %v468 = vld [vmem:[%s3 + $0x568] sm:$0xff]
        %v469 = vld [vmem:[%s3 + $0x570] sm:$0xff]
        %v470 = vld [vmem:[%s3 + $0x578] sm:$0xff]
        %v471 = vld [vmem:[%s3 + $0x580] sm:$0xff]
        %v472 = vld [vmem:[%s3 + $0x588] sm:$0xff]
        %v473 = vld [vmem:[%s3 + $0x590] sm:$0xff]
        %v474 = vld [vmem:[%s3 + $0x598] sm:$0xff]
        %v475 = vld [vmem:[%s3 + $0x5a0] sm:$0xff]
        %v476 = vld [vmem:[%s3 + $0x5a8] sm:$0xff]
        %v477 = vld [vmem:[%s3 + $0x5b0] sm:$0xff]
        %v478 = vld [vmem:[%s3 + $0x5b8] sm:$0xff]
        %v479 = vld [vmem:[%s3 + $0x5c0] sm:$0xff]
        %v480 = vld [vmem:[%s3 + $0x5c8] sm:$0xff]
        %v481 = vld [vmem:[%s3 + $0x5d0] sm:$0xff]
        %v482 = vld [vmem:[%s3 + $0x5d8] sm:$0xff]
        %v483 = vld [vmem:[%s3 + $0x5e0] sm:$0xff]
        %v484 = vld [vmem:[%s3 + $0x5e8] sm:$0xff]
        %v485 = vld [vmem:[%s3 + $0x5f0] sm:$0xff]
        %v486 = vld [vmem:[%s3 + $0x5f8] sm:$0xff]
        %v487 = vld [vmem:[%s3 + $0x600] sm:$0xff]
        %v488 = vld [vmem:[%s3 + $0x608] sm:$0xff]
        %v489 = vld [vmem:[%s3 + $0x610] sm:$0xff]
        %v490 = vld [vmem:[%s3 + $0x618] sm:$0xff]
        %v491 = vld [vmem:[%s3 + $0x620] sm:$0xff]
        %v492 = vld [vmem:[%s3 + $0x628] sm:$0xff]
        %v493 = vld [vmem:[%s3 + $0x630] sm:$0xff]
        %v494 = vld [vmem:[%s3 + $0x638] sm:$0xff]
        %v495 = vld [vmem:[%s3 + $0x640] sm:$0xff]
        %v496 = vld [vmem:[%s3 + $0x648] sm:$0xff]
        %v497 = vld [vmem:[%s3 + $0x650] sm:$0xff]
        %v498 = vld [vmem:[%s3 + $0x658] sm:$0xff]
        %v499 = vld [vmem:[%s3 + $0x660] sm:$0xff]
        %v500 = vld [vmem:[%s3 + $0x668] sm:$0xff]
        %v501 = vld [vmem:[%s3 + $0x670] sm:$0xff]
        %v502 = vld [vmem:[%s3 + $0x678] sm:$0xff]
        %v503 = vld [vmem:[%s3 + $0x680] sm:$0xff]
        %v504 = vld [vmem:[%s3 + $0x688] sm:$0xff]
        %v505 = vld [vmem:[%s3 + $0x690] sm:$0xff]
        %v506 = vld [vmem:[%s3 + $0x698] sm:$0xff]
        %v507 = vld [vmem:[%s3 + $0x6a0] sm:$0xff]
        %v508 = vld [vmem:[%s3 + $0x6a8] sm:$0xff]
        %v509 = vld [vmem:[%s3 + $0x6b0] sm:$0xff]
        %v510 = vld [vmem:[%s3 + $0x6b8] sm:$0xff]
        %v511 = vld [vmem:[%s3 + $0x6c0] sm:$0xff]
        %v512 = vld [vmem:[%s3 + $0x6c8] sm:$0xff]
        %v513 = vld [vmem:[%s3 + $0x6d0] sm:$0xff]
        %v514 = vld [vmem:[%s3 + $0x6d8] sm:$0xff]
        %v515 = vld [vmem:[%s3 + $0x6e0] sm:$0xff]
        %v516 = vld [vmem:[%s3 + $0x6e8] sm:$0xff]
        %v517 = vld [vmem:[%s3 + $0x6f0] sm:$0xff]
        %v518 = vld [vmem:[%s3 + $0x6f8] sm:$0xff]
        %v519 = vld [vmem:[%s3 + $0x700] sm:$0xff]
        %v520 = vld [vmem:[%s3 + $0x708] sm:$0xff]
        %v521 = vld [vmem:[%s3 + $0x710] sm:$0xff]
        %v522 = vld [vmem:[%s3 + $0x718] sm:$0xff]
        %v523 = vld [vmem:[%s3 + $0x720] sm:$0xff]
        %v524 = vld [vmem:[%s3 + $0x728] sm:$0xff]
        %v525 = vld [vmem:[%s3 + $0x730] sm:$0xff]
        %v526 = vld [vmem:[%s3 + $0x738] sm:$0xff]
        %v527 = vld [vmem:[%s3 + $0x740] sm:$0xff]
        %v528 = vld [vmem:[%s3 + $0x748] sm:$0xff]
        %v529 = vld [vmem:[%s3 + $0x750] sm:$0xff]
        %v530 = vld [vmem:[%s3 + $0x758] sm:$0xff]
        %v531 = vld [vmem:[%s3 + $0x760] sm:$0xff]
        %v532 = vld [vmem:[%s3 + $0x768] sm:$0xff]
        %v533 = vld [vmem:[%s3 + $0x770] sm:$0xff]
        %v534 = vld [vmem:[%s3 + $0x778] sm:$0xff]
        %v535 = vld [vmem:[%s3 + $0x780] sm:$0xff]
        %v536 = vld [vmem:[%s3 + $0x788] sm:$0xff]
        %v537 = vld [vmem:[%s3 + $0x790] sm:$0xff]
        %v538 = vld [vmem:[%s3 + $0x798] sm:$0xff]
        %v539 = vld [vmem:[%s3 + $0x7a0] sm:$0xff]
        %v540 = vld [vmem:[%s3 + $0x7a8] sm:$0xff]
        %v541 = vld [vmem:[%s3 + $0x7b0] sm:$0xff]
        %v542 = vld [vmem:[%s3 + $0x7b8] sm:$0xff]
        %v543 = vld [vmem:[%s3 + $0x7c0] sm:$0xff]
        %v544 = vld [vmem:[%s3 + $0x7c8] sm:$0xff]
        %v545 = vld [vmem:[%s3 + $0x7d0] sm:$0xff]
        %v546 = vld [vmem:[%s3 + $0x7d8] sm:$0xff]
        %v547 = vld [vmem:[%s3 + $0x7e0] sm:$0xff]
        %v548 = vld [vmem:[%s3 + $0x7e8] sm:$0xff]
        %v549 = vld [vmem:[%s3 + $0x7f0] sm:$0xff]
        %v550 = vld [vmem:[%s3 + $0x7f8] sm:$0xff]
        %v551 = vld [vmem:[%s4] sm:$0x1]
        %553 = vset.pattern.permute.xlu0 0
        %554 = vperm.xlu0 %553, %v273
        %v555 = vpop.permute.xlu0 %554
        %v557 = vlaneseq
        %v558 = vshrl.u32 %v557, 7
        %v559 = vsub.s32 0, %v558
        %v560 = vrot.slane %v551, %v559
        %v561 = vmul.f32 %v555, %v560
        %562 = vmatprep.subr.mxu0 0.0
        %563 = vmatpush1.msra.mxu0 %v295
        %564 = vmatprep.subr.mxu0 0.0
        %565 = vmatpush1.msra.mxu0 %v296
        %566 = vmatprep.subr.mxu0 0.0
        %567 = vmatpush1.msra.mxu0 %v297
        %568 = vmatprep.subr.mxu0 0.0
        %569 = vmatpush1.msra.mxu0 %v298
        %570 = vmatprep.subr.mxu0 0.0
        %571 = vmatpush1.msra.mxu0 %v299
        %572 = vmatprep.subr.mxu0 0.0
        %573 = vmatpush1.msra.mxu0 %v300
        %574 = vmatprep.subr.mxu0 0.0
        %575 = vmatpush1.msra.mxu0 %v301
        %576 = vmatprep.subr.mxu0 0.0
        %577 = vmatpush1.msra.mxu0 %v302
        %578 = vmatprep.subr.mxu0 0.0
        %579 = vmatpush1.msra.mxu0 %v303
        %580 = vmatprep.subr.mxu0 0.0
        %581 = vmatpush1.msra.mxu0 %v304
        %582 = vmatprep.subr.mxu0 0.0
        %583 = vmatpush1.msra.mxu0 %v305
        %584 = vmatprep.subr.mxu0 0.0
        %585 = vmatpush1.msra.mxu0 %v306
        %586 = vmatprep.subr.mxu0 0.0
        %587 = vmatpush1.msra.mxu0 %v307
        %588 = vmatprep.subr.mxu0 0.0
        %589 = vmatpush1.msra.mxu0 %v308
        %590 = vmatprep.subr.mxu0 0.0
        %591 = vmatpush1.msra.mxu0 %v309
        %592 = vmatprep.subr.mxu0 0.0
        %593 = vmatpush1.msra.mxu0 %v310
        %594 = vmatprep.subr.mxu0 0.0
        %595 = vmatpush1.msra.mxu0 %v311
        %596 = vmatprep.subr.mxu0 0.0
        %597 = vmatpush1.msra.mxu0 %v312
        %598 = vmatprep.subr.mxu0 0.0
        %599 = vmatpush1.msra.mxu0 %v313
        %600 = vmatprep.subr.mxu0 0.0
        %601 = vmatpush1.msra.mxu0 %v314
        %602 = vmatprep.subr.mxu0 0.0
        %603 = vmatpush1.msra.mxu0 %v315
        %604 = vmatprep.subr.mxu0 0.0
        %605 = vmatpush1.msra.mxu0 %v316
        %606 = vmatprep.subr.mxu0 0.0
        %607 = vmatpush1.msra.mxu0 %v317
        %608 = vmatprep.subr.mxu0 0.0
        %609 = vmatpush1.msra.mxu0 %v318
        %610 = vmatprep.subr.mxu0 0.0
        %611 = vmatpush1.msra.mxu0 %v319
        %612 = vmatprep.subr.mxu0 0.0
        %613 = vmatpush1.msra.mxu0 %v320
        %614 = vmatprep.subr.mxu0 0.0
        %615 = vmatpush1.msra.mxu0 %v321
        %616 = vmatprep.subr.mxu0 0.0
        %617 = vmatpush1.msra.mxu0 %v322
        %618 = vmatprep.subr.mxu0 0.0
        %619 = vmatpush1.msra.mxu0 %v323
        %620 = vmatprep.subr.mxu0 0.0
        %621 = vmatpush1.msra.mxu0 %v324
        %622 = vmatprep.subr.mxu0 0.0
        %623 = vmatpush1.msra.mxu0 %v325
        %624 = vmatprep.subr.mxu0 0.0
        %625 = vmatpush1.msra.mxu0 %v326
        %626 = vmatprep.mubr.f32.mxu0 %v280
        %627 = vmatmul.mubr.f32.gmra.mrb[0].mxu0 %v279
        %v628 = vpop.f32.mrb[0].mxu0
        %v629 = vadd.f32 %v561, %v628
        %v630 = vpop.f32.mrb[0].mxu0
        %631 = vdwg.mxu0
        %632 = vmatprep.subr.mxu0 0.0
        %633 = vmatpush1.msra.mxu0 %v327
        %634 = vmatprep.subr.mxu0 0.0
        %635 = vmatpush1.msra.mxu0 %v328
        %636 = vmatprep.subr.mxu0 0.0
        %637 = vmatpush1.msra.mxu0 %v329
        %638 = vmatprep.subr.mxu0 0.0
        %639 = vmatpush1.msra.mxu0 %v330
        %640 = vmatprep.subr.mxu0 0.0
        %641 = vmatpush1.msra.mxu0 %v331
        %642 = vmatprep.subr.mxu0 0.0
        %643 = vmatpush1.msra.mxu0 %v332
        %644 = vmatprep.subr.mxu0 0.0
        %645 = vmatpush1.msra.mxu0 %v333
        %646 = vmatprep.subr.mxu0 0.0
        %647 = vmatpush1.msra.mxu0 %v334
        %648 = vmatprep.subr.mxu0 0.0
        %649 = vmatpush1.msra.mxu0 %v335
        %650 = vmatprep.subr.mxu0 0.0
        %651 = vmatpush1.msra.mxu0 %v336
        %652 = vmatprep.subr.mxu0 0.0
        %653 = vmatpush1.msra.mxu0 %v337
        %654 = vmatprep.subr.mxu0 0.0
        %655 = vmatpush1.msra.mxu0 %v338
        %656 = vmatprep.subr.mxu0 0.0
        %657 = vmatpush1.msra.mxu0 %v339
        %658 = vmatprep.subr.mxu0 0.0
        %659 = vmatpush1.msra.mxu0 %v340
        %660 = vmatprep.subr.mxu0 0.0
        %661 = vmatpush1.msra.mxu0 %v341
        %662 = vmatprep.subr.mxu0 0.0
        %663 = vmatpush1.msra.mxu0 %v342
        %664 = vmatprep.subr.mxu0 0.0
        %665 = vmatpush1.msra.mxu0 %v343
        %666 = vmatprep.subr.mxu0 0.0
        %667 = vmatpush1.msra.mxu0 %v344
        %668 = vmatprep.subr.mxu0 0.0
        %669 = vmatpush1.msra.mxu0 %v345
        %670 = vmatprep.subr.mxu0 0.0
        %671 = vmatpush1.msra.mxu0 %v346
        %672 = vmatprep.subr.mxu0 0.0
        %673 = vmatpush1.msra.mxu0 %v347
        %674 = vmatprep.subr.mxu0 0.0
        %675 = vmatpush1.msra.mxu0 %v348
        %676 = vmatprep.subr.mxu0 0.0
        %677 = vmatpush1.msra.mxu0 %v349
        %678 = vmatprep.subr.mxu0 0.0
        %679 = vmatpush1.msra.mxu0 %v350
        %680 = vmatprep.subr.mxu0 0.0
        %681 = vmatpush1.msra.mxu0 %v351
        %682 = vmatprep.subr.mxu0 0.0
        %683 = vmatpush1.msra.mxu0 %v352
        %684 = vmatprep.subr.mxu0 0.0
        %685 = vmatpush1.msra.mxu0 %v353
        %686 = vmatprep.subr.mxu0 0.0
        %687 = vmatpush1.msra.mxu0 %v354
        %688 = vmatprep.subr.mxu0 0.0
        %689 = vmatpush1.msra.mxu0 %v355
        %690 = vmatprep.subr.mxu0 0.0
        %691 = vmatpush1.msra.mxu0 %v356
        %692 = vmatprep.subr.mxu0 0.0
        %693 = vmatpush1.msra.mxu0 %v357
        %694 = vmatprep.subr.mxu0 0.0
        %695 = vmatpush1.msra.mxu0 %v358
        %696 = vmatprep.mubr.f32.mxu0 %v282
        %697 = vmatmul.mubr.f32.gmra.mrb[0].mxu0 %v281
        %v698 = vpop.f32.mrb[0].mxu0
        %v699 = vadd.f32 %v629, %v698
        %v700 = vpop.f32.mrb[0].mxu0
        %701 = vdwg.mxu0
        %702 = vmatprep.subr.mxu0 0.0
        %703 = vmatpush1.msra.mxu0 %v359
        %704 = vmatprep.subr.mxu0 0.0
        %705 = vmatpush1.msra.mxu0 %v360
        %706 = vmatprep.subr.mxu0 0.0
        %707 = vmatpush1.msra.mxu0 %v361
        %708 = vmatprep.subr.mxu0 0.0
        %709 = vmatpush1.msra.mxu0 %v362
        %710 = vmatprep.subr.mxu0 0.0
        %711 = vmatpush1.msra.mxu0 %v363
        %712 = vmatprep.subr.mxu0 0.0
        %713 = vmatpush1.msra.mxu0 %v364
        %714 = vmatprep.subr.mxu0 0.0
        %715 = vmatpush1.msra.mxu0 %v365
        %716 = vmatprep.subr.mxu0 0.0
        %717 = vmatpush1.msra.mxu0 %v366
        %718 = vmatprep.subr.mxu0 0.0
        %719 = vmatpush1.msra.mxu0 %v367
        %720 = vmatprep.subr.mxu0 0.0
        %721 = vmatpush1.msra.mxu0 %v368
        %722 = vmatprep.subr.mxu0 0.0
        %723 = vmatpush1.msra.mxu0 %v369
        %724 = vmatprep.subr.mxu0 0.0
        %725 = vmatpush1.msra.mxu0 %v370
        %726 = vmatprep.subr.mxu0 0.0
        %727 = vmatpush1.msra.mxu0 %v371
        %728 = vmatprep.subr.mxu0 0.0
        %729 = vmatpush1.msra.mxu0 %v372
        %730 = vmatprep.subr.mxu0 0.0
        %731 = vmatpush1.msra.mxu0 %v373
        %732 = vmatprep.subr.mxu0 0.0
        %733 = vmatpush1.msra.mxu0 %v374
        %734 = vmatprep.subr.mxu0 0.0
        %735 = vmatpush1.msra.mxu0 %v375
        %736 = vmatprep.subr.mxu0 0.0
        %737 = vmatpush1.msra.mxu0 %v376
        %738 = vmatprep.subr.mxu0 0.0
        %739 = vmatpush1.msra.mxu0 %v377
        %740 = vmatprep.subr.mxu0 0.0
        %741 = vmatpush1.msra.mxu0 %v378
        %742 = vmatprep.subr.mxu0 0.0
        %743 = vmatpush1.msra.mxu0 %v379
        %744 = vmatprep.subr.mxu0 0.0
        %745 = vmatpush1.msra.mxu0 %v380
        %746 = vmatprep.subr.mxu0 0.0
        %747 = vmatpush1.msra.mxu0 %v381
        %748 = vmatprep.subr.mxu0 0.0
        %749 = vmatpush1.msra.mxu0 %v382
        %750 = vmatprep.subr.mxu0 0.0
        %751 = vmatpush1.msra.mxu0 %v383
        %752 = vmatprep.subr.mxu0 0.0
        %753 = vmatpush1.msra.mxu0 %v384
        %754 = vmatprep.subr.mxu0 0.0
        %755 = vmatpush1.msra.mxu0 %v385
        %756 = vmatprep.subr.mxu0 0.0
        %757 = vmatpush1.msra.mxu0 %v386
        %758 = vmatprep.subr.mxu0 0.0
        %759 = vmatpush1.msra.mxu0 %v387
        %760 = vmatprep.subr.mxu0 0.0
        %761 = vmatpush1.msra.mxu0 %v388
        %762 = vmatprep.subr.mxu0 0.0
        %763 = vmatpush1.msra.mxu0 %v389
        %764 = vmatprep.subr.mxu0 0.0
        %765 = vmatpush1.msra.mxu0 %v390
        %766 = vmatprep.mubr.f32.mxu0 %v284
        %767 = vmatmul.mubr.f32.gmra.mrb[0].mxu0 %v283
        %v768 = vpop.f32.mrb[0].mxu0
        %v769 = vadd.f32 %v699, %v768
        %v770 = vpop.f32.mrb[0].mxu0
        %771 = vdwg.mxu0
        %772 = vmatprep.subr.mxu0 0.0
        %773 = vmatpush1.msra.mxu0 %v391
        %774 = vmatprep.subr.mxu0 0.0
        %775 = vmatpush1.msra.mxu0 %v392
        %776 = vmatprep.subr.mxu0 0.0
        %777 = vmatpush1.msra.mxu0 %v393
        %778 = vmatprep.subr.mxu0 0.0
        %779 = vmatpush1.msra.mxu0 %v394
        %780 = vmatprep.subr.mxu0 0.0
        %781 = vmatpush1.msra.mxu0 %v395
        %782 = vmatprep.subr.mxu0 0.0
        %783 = vmatpush1.msra.mxu0 %v396
        %784 = vmatprep.subr.mxu0 0.0
        %785 = vmatpush1.msra.mxu0 %v397
        %786 = vmatprep.subr.mxu0 0.0
        %787 = vmatpush1.msra.mxu0 %v398
        %788 = vmatprep.subr.mxu0 0.0
        %789 = vmatpush1.msra.mxu0 %v399
        %790 = vmatprep.subr.mxu0 0.0
        %791 = vmatpush1.msra.mxu0 %v400
        %792 = vmatprep.subr.mxu0 0.0
        %793 = vmatpush1.msra.mxu0 %v401
        %794 = vmatprep.subr.mxu0 0.0
        %795 = vmatpush1.msra.mxu0 %v402
        %796 = vmatprep.subr.mxu0 0.0
        %797 = vmatpush1.msra.mxu0 %v403
        %798 = vmatprep.subr.mxu0 0.0
        %799 = vmatpush1.msra.mxu0 %v404
        %800 = vmatprep.subr.mxu0 0.0
        %801 = vmatpush1.msra.mxu0 %v405
        %802 = vmatprep.subr.mxu0 0.0
        %803 = vmatpush1.msra.mxu0 %v406
        %804 = vmatprep.subr.mxu0 0.0
        %805 = vmatpush1.msra.mxu0 %v407
        %806 = vmatprep.subr.mxu0 0.0
        %807 = vmatpush1.msra.mxu0 %v408
        %808 = vmatprep.subr.mxu0 0.0
        %809 = vmatpush1.msra.mxu0 %v409
        %810 = vmatprep.subr.mxu0 0.0
        %811 = vmatpush1.msra.mxu0 %v410
        %812 = vmatprep.subr.mxu0 0.0
        %813 = vmatpush1.msra.mxu0 %v411
        %814 = vmatprep.subr.mxu0 0.0
        %815 = vmatpush1.msra.mxu0 %v412
        %816 = vmatprep.subr.mxu0 0.0
        %817 = vmatpush1.msra.mxu0 %v413
        %818 = vmatprep.subr.mxu0 0.0
        %819 = vmatpush1.msra.mxu0 %v414
        %820 = vmatprep.subr.mxu0 0.0
        %821 = vmatpush1.msra.mxu0 %v415
        %822 = vmatprep.subr.mxu0 0.0
        %823 = vmatpush1.msra.mxu0 %v416
        %824 = vmatprep.subr.mxu0 0.0
        %825 = vmatpush1.msra.mxu0 %v417
        %826 = vmatprep.subr.mxu0 0.0
        %827 = vmatpush1.msra.mxu0 %v418
        %828 = vmatprep.subr.mxu0 0.0
        %829 = vmatpush1.msra.mxu0 %v419
        %830 = vmatprep.subr.mxu0 0.0
        %831 = vmatpush1.msra.mxu0 %v420
        %832 = vmatprep.subr.mxu0 0.0
        %833 = vmatpush1.msra.mxu0 %v421
        %834 = vmatprep.subr.mxu0 0.0
        %835 = vmatpush1.msra.mxu0 %v422
        %836 = vmatprep.mubr.f32.mxu0 %v286
        %837 = vmatmul.mubr.f32.gmra.mrb[0].mxu0 %v285
        %v838 = vpop.f32.mrb[0].mxu0
        %v839 = vadd.f32 %v769, %v838
        %v840 = vpop.f32.mrb[0].mxu0
        %841 = vdwg.mxu0
        %842 = vmatprep.subr.mxu0 0.0
        %843 = vmatpush1.msra.mxu0 %v423
        %844 = vmatprep.subr.mxu0 0.0
        %845 = vmatpush1.msra.mxu0 %v424
        %846 = vmatprep.subr.mxu0 0.0
        %847 = vmatpush1.msra.mxu0 %v425
        %848 = vmatprep.subr.mxu0 0.0
        %849 = vmatpush1.msra.mxu0 %v426
        %850 = vmatprep.subr.mxu0 0.0
        %851 = vmatpush1.msra.mxu0 %v427
        %852 = vmatprep.subr.mxu0 0.0
        %853 = vmatpush1.msra.mxu0 %v428
        %854 = vmatprep.subr.mxu0 0.0
        %855 = vmatpush1.msra.mxu0 %v429
        %856 = vmatprep.subr.mxu0 0.0
        %857 = vmatpush1.msra.mxu0 %v430
        %858 = vmatprep.subr.mxu0 0.0
        %859 = vmatpush1.msra.mxu0 %v431
        %860 = vmatprep.subr.mxu0 0.0
        %861 = vmatpush1.msra.mxu0 %v432
        %862 = vmatprep.subr.mxu0 0.0
        %863 = vmatpush1.msra.mxu0 %v433
        %864 = vmatprep.subr.mxu0 0.0
        %865 = vmatpush1.msra.mxu0 %v434
        %866 = vmatprep.subr.mxu0 0.0
        %867 = vmatpush1.msra.mxu0 %v435
        %868 = vmatprep.subr.mxu0 0.0
        %869 = vmatpush1.msra.mxu0 %v436
        %870 = vmatprep.subr.mxu0 0.0
        %871 = vmatpush1.msra.mxu0 %v437
        %872 = vmatprep.subr.mxu0 0.0
        %873 = vmatpush1.msra.mxu0 %v438
        %874 = vmatprep.subr.mxu0 0.0
        %875 = vmatpush1.msra.mxu0 %v439
        %876 = vmatprep.subr.mxu0 0.0
        %877 = vmatpush1.msra.mxu0 %v440
        %878 = vmatprep.subr.mxu0 0.0
        %879 = vmatpush1.msra.mxu0 %v441
        %880 = vmatprep.subr.mxu0 0.0
        %881 = vmatpush1.msra.mxu0 %v442
        %882 = vmatprep.subr.mxu0 0.0
        %883 = vmatpush1.msra.mxu0 %v443
        %884 = vmatprep.subr.mxu0 0.0
        %885 = vmatpush1.msra.mxu0 %v444
        %886 = vmatprep.subr.mxu0 0.0
        %887 = vmatpush1.msra.mxu0 %v445
        %888 = vmatprep.subr.mxu0 0.0
        %889 = vmatpush1.msra.mxu0 %v446
        %890 = vmatprep.subr.mxu0 0.0
        %891 = vmatpush1.msra.mxu0 %v447
        %892 = vmatprep.subr.mxu0 0.0
        %893 = vmatpush1.msra.mxu0 %v448
        %894 = vmatprep.subr.mxu0 0.0
        %895 = vmatpush1.msra.mxu0 %v449
        %896 = vmatprep.subr.mxu0 0.0
        %897 = vmatpush1.msra.mxu0 %v450
        %898 = vmatprep.subr.mxu0 0.0
        %899 = vmatpush1.msra.mxu0 %v451
        %900 = vmatprep.subr.mxu0 0.0
        %901 = vmatpush1.msra.mxu0 %v452
        %902 = vmatprep.subr.mxu0 0.0
        %903 = vmatpush1.msra.mxu0 %v453
        %904 = vmatprep.subr.mxu0 0.0
        %905 = vmatpush1.msra.mxu0 %v454
        %906 = vmatprep.mubr.f32.mxu0 %v288
        %907 = vmatmul.mubr.f32.gmra.mrb[0].mxu0 %v287
        %v908 = vpop.f32.mrb[0].mxu0
        %v909 = vadd.f32 %v839, %v908
        %v910 = vpop.f32.mrb[0].mxu0
        %911 = vdwg.mxu0
        %912 = vmatprep.subr.mxu0 0.0
        %913 = vmatpush1.msra.mxu0 %v455
        %914 = vmatprep.subr.mxu0 0.0
        %915 = vmatpush1.msra.mxu0 %v456
        %916 = vmatprep.subr.mxu0 0.0
        %917 = vmatpush1.msra.mxu0 %v457
        %918 = vmatprep.subr.mxu0 0.0
        %919 = vmatpush1.msra.mxu0 %v458
        %920 = vmatprep.subr.mxu0 0.0
        %921 = vmatpush1.msra.mxu0 %v459
        %922 = vmatprep.subr.mxu0 0.0
        %923 = vmatpush1.msra.mxu0 %v460
        %924 = vmatprep.subr.mxu0 0.0
        %925 = vmatpush1.msra.mxu0 %v461
        %926 = vmatprep.subr.mxu0 0.0
        %927 = vmatpush1.msra.mxu0 %v462
        %928 = vmatprep.subr.mxu0 0.0
        %929 = vmatpush1.msra.mxu0 %v463
        %930 = vmatprep.subr.mxu0 0.0
        %931 = vmatpush1.msra.mxu0 %v464
        %932 = vmatprep.subr.mxu0 0.0
        %933 = vmatpush1.msra.mxu0 %v465
        %934 = vmatprep.subr.mxu0 0.0
        %935 = vmatpush1.msra.mxu0 %v466
        %936 = vmatprep.subr.mxu0 0.0
        %937 = vmatpush1.msra.mxu0 %v467
        %938 = vmatprep.subr.mxu0 0.0
        %939 = vmatpush1.msra.mxu0 %v468
        %940 = vmatprep.subr.mxu0 0.0
        %941 = vmatpush1.msra.mxu0 %v469
        %942 = vmatprep.subr.mxu0 0.0
        %943 = vmatpush1.msra.mxu0 %v470
        %944 = vmatprep.subr.mxu0 0.0
        %945 = vmatpush1.msra.mxu0 %v471
        %946 = vmatprep.subr.mxu0 0.0
        %947 = vmatpush1.msra.mxu0 %v472
        %948 = vmatprep.subr.mxu0 0.0
        %949 = vmatpush1.msra.mxu0 %v473
        %950 = vmatprep.subr.mxu0 0.0
        %951 = vmatpush1.msra.mxu0 %v474
        %952 = vmatprep.subr.mxu0 0.0
        %953 = vmatpush1.msra.mxu0 %v475
        %954 = vmatprep.subr.mxu0 0.0
        %955 = vmatpush1.msra.mxu0 %v476
        %956 = vmatprep.subr.mxu0 0.0
        %957 = vmatpush1.msra.mxu0 %v477
        %958 = vmatprep.subr.mxu0 0.0
        %959 = vmatpush1.msra.mxu0 %v478
        %960 = vmatprep.subr.mxu0 0.0
        %961 = vmatpush1.msra.mxu0 %v479
        %962 = vmatprep.subr.mxu0 0.0
        %963 = vmatpush1.msra.mxu0 %v480
        %964 = vmatprep.subr.mxu0 0.0
        %965 = vmatpush1.msra.mxu0 %v481
        %966 = vmatprep.subr.mxu0 0.0
        %967 = vmatpush1.msra.mxu0 %v482
        %968 = vmatprep.subr.mxu0 0.0
        %969 = vmatpush1.msra.mxu0 %v483
        %970 = vmatprep.subr.mxu0 0.0
        %971 = vmatpush1.msra.mxu0 %v484
        %972 = vmatprep.subr.mxu0 0.0
        %973 = vmatpush1.msra.mxu0 %v485
        %974 = vmatprep.subr.mxu0 0.0
        %975 = vmatpush1.msra.mxu0 %v486
        %976 = vmatprep.mubr.f32.mxu0 %v290
        %977 = vmatmul.mubr.f32.gmra.mrb[0].mxu0 %v289
        %v978 = vpop.f32.mrb[0].mxu0
        %v979 = vadd.f32 %v909, %v978
        %v980 = vpop.f32.mrb[0].mxu0
        %981 = vdwg.mxu0
        %982 = vmatprep.subr.mxu0 0.0
        %983 = vmatpush1.msra.mxu0 %v487
        %984 = vmatprep.subr.mxu0 0.0
        %985 = vmatpush1.msra.mxu0 %v488
        %986 = vmatprep.subr.mxu0 0.0
        %987 = vmatpush1.msra.mxu0 %v489
        %988 = vmatprep.subr.mxu0 0.0
        %989 = vmatpush1.msra.mxu0 %v490
        %990 = vmatprep.subr.mxu0 0.0
        %991 = vmatpush1.msra.mxu0 %v491
        %992 = vmatprep.subr.mxu0 0.0
        %993 = vmatpush1.msra.mxu0 %v492
        %994 = vmatprep.subr.mxu0 0.0
        %995 = vmatpush1.msra.mxu0 %v493
        %996 = vmatprep.subr.mxu0 0.0
        %997 = vmatpush1.msra.mxu0 %v494
        %998 = vmatprep.subr.mxu0 0.0
        %999 = vmatpush1.msra.mxu0 %v495
        %1000 = vmatprep.subr.mxu0 0.0
        %1001 = vmatpush1.msra.mxu0 %v496
        %1002 = vmatprep.subr.mxu0 0.0
        %1003 = vmatpush1.msra.mxu0 %v497
        %1004 = vmatprep.subr.mxu0 0.0
        %1005 = vmatpush1.msra.mxu0 %v498
        %1006 = vmatprep.subr.mxu0 0.0
        %1007 = vmatpush1.msra.mxu0 %v499
        %1008 = vmatprep.subr.mxu0 0.0
        %1009 = vmatpush1.msra.mxu0 %v500
        %1010 = vmatprep.subr.mxu0 0.0
        %1011 = vmatpush1.msra.mxu0 %v501
        %1012 = vmatprep.subr.mxu0 0.0
        %1013 = vmatpush1.msra.mxu0 %v502
        %1014 = vmatprep.subr.mxu0 0.0
        %1015 = vmatpush1.msra.mxu0 %v503
        %1016 = vmatprep.subr.mxu0 0.0
        %1017 = vmatpush1.msra.mxu0 %v504
        %1018 = vmatprep.subr.mxu0 0.0
        %1019 = vmatpush1.msra.mxu0 %v505
        %1020 = vmatprep.subr.mxu0 0.0
        %1021 = vmatpush1.msra.mxu0 %v506
        %1022 = vmatprep.subr.mxu0 0.0
        %1023 = vmatpush1.msra.mxu0 %v507
        %1024 = vmatprep.subr.mxu0 0.0
        %1025 = vmatpush1.msra.mxu0 %v508
        %1026 = vmatprep.subr.mxu0 0.0
        %1027 = vmatpush1.msra.mxu0 %v509
        %1028 = vmatprep.subr.mxu0 0.0
        %1029 = vmatpush1.msra.mxu0 %v510
        %1030 = vmatprep.subr.mxu0 0.0
        %1031 = vmatpush1.msra.mxu0 %v511
        %1032 = vmatprep.subr.mxu0 0.0
        %1033 = vmatpush1.msra.mxu0 %v512
        %1034 = vmatprep.subr.mxu0 0.0
        %1035 = vmatpush1.msra.mxu0 %v513
        %1036 = vmatprep.subr.mxu0 0.0
        %1037 = vmatpush1.msra.mxu0 %v514
        %1038 = vmatprep.subr.mxu0 0.0
        %1039 = vmatpush1.msra.mxu0 %v515
        %1040 = vmatprep.subr.mxu0 0.0
        %1041 = vmatpush1.msra.mxu0 %v516
        %1042 = vmatprep.subr.mxu0 0.0
        %1043 = vmatpush1.msra.mxu0 %v517
        %1044 = vmatprep.subr.mxu0 0.0
        %1045 = vmatpush1.msra.mxu0 %v518
        %1046 = vmatprep.mubr.f32.mxu0 %v292
        %1047 = vmatmul.mubr.f32.gmra.mrb[0].mxu0 %v291
        %v1048 = vpop.f32.mrb[0].mxu0
        %v1049 = vadd.f32 %v979, %v1048
        %v1050 = vpop.f32.mrb[0].mxu0
        %1051 = vdwg.mxu0
        %1052 = vmatprep.subr.mxu0 0.0
        %1053 = vmatpush1.msra.mxu0 %v519
        %1054 = vmatprep.subr.mxu0 0.0
        %1055 = vmatpush1.msra.mxu0 %v520
        %1056 = vmatprep.subr.mxu0 0.0
        %1057 = vmatpush1.msra.mxu0 %v521
        %1058 = vmatprep.subr.mxu0 0.0
        %1059 = vmatpush1.msra.mxu0 %v522
        %1060 = vmatprep.subr.mxu0 0.0
        %1061 = vmatpush1.msra.mxu0 %v523
        %1062 = vmatprep.subr.mxu0 0.0
        %1063 = vmatpush1.msra.mxu0 %v524
        %1064 = vmatprep.subr.mxu0 0.0
        %1065 = vmatpush1.msra.mxu0 %v525
        %1066 = vmatprep.subr.mxu0 0.0
        %1067 = vmatpush1.msra.mxu0 %v526
        %1068 = vmatprep.subr.mxu0 0.0
        %1069 = vmatpush1.msra.mxu0 %v527
        %1070 = vmatprep.subr.mxu0 0.0
        %1071 = vmatpush1.msra.mxu0 %v528
        %1072 = vmatprep.subr.mxu0 0.0
        %1073 = vmatpush1.msra.mxu0 %v529
        %1074 = vmatprep.subr.mxu0 0.0
        %1075 = vmatpush1.msra.mxu0 %v530
        %1076 = vmatprep.subr.mxu0 0.0
        %1077 = vmatpush1.msra.mxu0 %v531
        %1078 = vmatprep.subr.mxu0 0.0
        %1079 = vmatpush1.msra.mxu0 %v532
        %1080 = vmatprep.subr.mxu0 0.0
        %1081 = vmatpush1.msra.mxu0 %v533
        %1082 = vmatprep.subr.mxu0 0.0
        %1083 = vmatpush1.msra.mxu0 %v534
        %1084 = vmatprep.subr.mxu0 0.0
        %1085 = vmatpush1.msra.mxu0 %v535
        %1086 = vmatprep.subr.mxu0 0.0
        %1087 = vmatpush1.msra.mxu0 %v536
        %1088 = vmatprep.subr.mxu0 0.0
        %1089 = vmatpush1.msra.mxu0 %v537
        %1090 = vmatprep.subr.mxu0 0.0
        %1091 = vmatpush1.msra.mxu0 %v538
        %1092 = vmatprep.subr.mxu0 0.0
        %1093 = vmatpush1.msra.mxu0 %v539
        %1094 = vmatprep.subr.mxu0 0.0
        %1095 = vmatpush1.msra.mxu0 %v540
        %1096 = vmatprep.subr.mxu0 0.0
        %1097 = vmatpush1.msra.mxu0 %v541
        %1098 = vmatprep.subr.mxu0 0.0
        %1099 = vmatpush1.msra.mxu0 %v542
        %1100 = vmatprep.subr.mxu0 0.0
        %1101 = vmatpush1.msra.mxu0 %v543
        %1102 = vmatprep.subr.mxu0 0.0
        %1103 = vmatpush1.msra.mxu0 %v544
        %1104 = vmatprep.subr.mxu0 0.0
        %1105 = vmatpush1.msra.mxu0 %v545
        %1106 = vmatprep.subr.mxu0 0.0
        %1107 = vmatpush1.msra.mxu0 %v546
        %1108 = vmatprep.subr.mxu0 0.0
        %1109 = vmatpush1.msra.mxu0 %v547
        %1110 = vmatprep.subr.mxu0 0.0
        %1111 = vmatpush1.msra.mxu0 %v548
        %1112 = vmatprep.subr.mxu0 0.0
        %1113 = vmatpush1.msra.mxu0 %v549
        %1114 = vmatprep.subr.mxu0 0.0
        %1115 = vmatpush1.msra.mxu0 %v550
        %1116 = vmatprep.mubr.f32.mxu0 %v294
        %1117 = vmatmul.mubr.f32.gmra.mrb[0].mxu0 %v293
        %v1118 = vpop.f32.mrb[0].mxu0
        %v1119 = vadd.f32 %v1049, %v1118
        %v1120 = vpop.f32.mrb[0].mxu0
        %1121 = vdwg.mxu0
        %v1122 = vld [vmem:[%s4 + $0x1] sm:$0x1]
        %v1123 = vlaneseq
        %v1124 = vshrl.u32 %v1123, 7
        %v1125 = vsub.s32 0, %v1124
        %v1126 = vrot.slane %v1122, %v1125
        %v1127 = vadd.f32 %v1119, %v1126
        %1129 = vrot.lane.b32.xlu0 %v1127, 124
        %v1130 = vpop.permute.xlu0 %1129
        %v1132 = vmax.f32 %v1127, %v1130
        %1133 = vrot.lane.b32.xlu0 %v1127, 120
        %v1134 = vpop.permute.xlu0 %1133
        %v1136 = vmax.f32 %v1132, %v1134
        %v1137 = vsub.f32 %v1127, %v1136
        %v1138 = vmul.f32 %v1137, 1.442695
        %v1139 = vpow.pop %v1138
        %1141 = vrot.lane.b32.xlu0 %v1136, 4
        %v1142 = vpop.permute.xlu0 %1141
        %v1144 = vsub.f32 %v1127, %v1142
        %v1145 = vmul.f32 %v1144, 1.442695
        %v1146 = vpow.pop %v1145
        %1148 = vrot.lane.b32.xlu0 %v1146, 124
        %v1149 = vpop.permute.xlu0 %1148
        %v1151 = vadd.f32 %v1139, %v1149
        %1152 = vrot.lane.b32.xlu0 %v1136, 8
        %v1153 = vpop.permute.xlu0 %1152
        %v1155 = vsub.f32 %v1127, %v1153
        %v1156 = vmul.f32 %v1155, 1.442695
        %v1157 = vpow.pop %v1156
        %1159 = vrot.lane.b32.xlu0 %v1157, 120
        %v1160 = vpop.permute.xlu0 %1159
        %v1162 = vadd.f32 %v1151, %v1160
        %v1163 = vlog2.pop %v1162
        %v1164 = vmul.f32 %v1163, 0.6931472
        %v1165 = vadd.f32 %v1136, %v1164
        %v1166 = vsub.f32 %v1127, %v1165
        %vm1167 = vcmask 31744
        %v1168 = vsel %vm1167, %v1166, 0.0
        %v1169 = vrot.slane %v1168, 4
        %v1170 = vadd.f32 %v1168, %v1169
        %v1171 = vrot.slane %v1170, 2
        %v1172 = vadd.f32 %v1170, %v1171
        %v1173 = vrot.slane %v1172, 1
        %v1174 = vadd.f32 %v1172, %v1173
        %v1175 = vmul.f32 %v1174, 0.125
        %1177 = vrot.lane.b32.xlu0 %v1165, 4
        %v1178 = vpop.permute.xlu0 %1177
        %v1180 = vsub.f32 %v1127, %v1178
        %vm1181 = vcmask 64544
        %v1182 = vsel %vm1181, %v1180, 0.0
        %v1183 = vrot.slane %v1182, 4
        %v1184 = vadd.f32 %v1182, %v1183
        %v1185 = vrot.slane %v1184, 2
        %v1186 = vadd.f32 %v1184, %v1185
        %v1187 = vrot.slane %v1186, 1
        %v1188 = vadd.f32 %v1186, %v1187
        %v1189 = vmul.f32 %v1188, 0.125
        %1190 = vrot.lane.b32.xlu0 %v1165, 8
        %v1191 = vpop.permute.xlu0 %1190
        %v1193 = vsub.f32 %v1127, %v1191
        %vm1194 = vcmask 97344
        %v1195 = vsel %vm1194, %v1193, 0.0
        %v1196 = vrot.slane %v1195, 4
        %v1197 = vadd.f32 %v1195, %v1196
        %v1198 = vrot.slane %v1197, 2
        %v1199 = vadd.f32 %v1197, %v1198
        %v1200 = vrot.slane %v1199, 1
        %v1201 = vadd.f32 %v1199, %v1200
        %v1202 = vmul.f32 %v1201, 0.125
        %1204 = vrot.lane.b32.xlu0 %v1189, 124
        %v1205 = vpop.permute.xlu0 %1204
        %v1207 = vmax.f32 %v1175, %v1205
        %1209 = vrot.lane.b32.xlu0 %v1202, 120
        %v1210 = vpop.permute.xlu0 %1209
        %v1212 = vmax.f32 %v1207, %v1210
        %v1213 = vsub.f32 %v1175, %v1212
        %v1214 = vmul.f32 %v1213, 1.442695
        %v1215 = vpow.pop %v1214
        %1217 = vrot.lane.b32.xlu0 %v1212, 4
        %v1218 = vpop.permute.xlu0 %1217
        %v1220 = vsub.f32 %v1189, %v1218
        %v1221 = vmul.f32 %v1220, 1.442695
        %v1222 = vpow.pop %v1221
        %1224 = vrot.lane.b32.xlu0 %v1222, 124
        %v1225 = vpop.permute.xlu0 %1224
        %v1227 = vadd.f32 %v1215, %v1225
        %1228 = vrot.lane.b32.xlu0 %v1212, 8
        %v1229 = vpop.permute.xlu0 %1228
        %v1231 = vsub.f32 %v1202, %v1229
        %v1232 = vmul.f32 %v1231, 1.442695
        %v1233 = vpow.pop %v1232
        %1235 = vrot.lane.b32.xlu0 %v1233, 120
        %v1236 = vpop.permute.xlu0 %1235
        %v1238 = vadd.f32 %v1227, %v1236
        %v1239 = vlog2.pop %v1238
        %v1240 = vmul.f32 %v1239, 0.6931472
        %v1241 = vadd.f32 %v1212, %v1240
        %v1242 = vsub.f32 %v1175, %v1241
        %vm1243 = vcmask 24576
        %1244 = vst.msk [vmem:[%s242] sm:$0x1] %vm1243, %v1242
        %1246 = vrot.lane.b32.xlu0 %v1241, 4
        %v1247 = vpop.permute.xlu0 %1246
        %v1249 = vsub.f32 %v1189, %v1247
        %vm1250 = vcmask 57376
        %1251 = vst.msk [vmem:[%s242] sm:$0x1] %vm1250, %v1249
        %1252 = vrot.lane.b32.xlu0 %v1241, 8
        %v1253 = vpop.permute.xlu0 %1252
        %v1255 = vsub.f32 %v1202, %v1253
        %vm1256 = vcmask 90176
        %1257 = vst.msk [vmem:[%s242] sm:$0x1] %vm1256, %v1255
        %s1258 = sand.u32 %s147, 1
        %s1259 = scalar_lea.sflag [#allocation3], %s1258
        %s1260 = sand.u32 %s147, 1
        %s1261 = scalar_lea.vmem [#allocation2], %s1260
        // Predicated region
        $region41: #{tpu_custom_call.1} parent=39 // pred_check
          %p1262 = pneg %p157
        $region42: #{tpu_custom_call.1} parent=39 // pred_check_branch
          %1264 = sbr.rel (%p1262) target = $region44
        $region43: #{tpu_custom_call.1} parent=39 // pred_region
          %s1266 = ssub.s32 16, 16
          %1267 = vsyncadd %s1259, %s1266
          %s1268 = smul.addr %s19, 16
          %s1269 = scalar_lea.hbm %s5, %s1268
          %s1271 = sshll.u32 %s1261, 4
          %s1272 = int_to_ptr.vmem [resolvable:$true] %s1271
          %1274 = dma.vmem_to_hbm [thread:$0]  %s1272, 16, %s1269, %s1259
        $region44: #{tpu_custom_call.1} parent=39 // pred_fallthru
          _
      $region40: #{tpu_custom_call.1} parent=5 // pred_fallthru
        _
      %p1275 = scmp.le.s32.totalorder 2, %s14
      // Predicated region
      $region45: #{tpu_custom_call.1} parent=5 // pred_check
        %p1276 = pneg %p1275
      $region46: #{tpu_custom_call.1} parent=5 // pred_check_branch
        %1278 = sbr.rel (%p1276) target = $region48
      $region47: #{tpu_custom_call.1} parent=5 // pred_region
        %s1279 = ssub.s32 %s14, 2
        // Predicated region
        $region49: #{tpu_custom_call.1} parent=47 // pred_check
          %p1280 = pneg %p163
        $region50: #{tpu_custom_call.1} parent=47 // pred_check_branch
          %1282 = sbr.rel (%p1280) target = $region52
        $region51: #{tpu_custom_call.1} parent=47 // pred_region
          %s1283 = sand.u32 %s148, 1
          %s1284 = scalar_lea.sflag [#allocation3], %s1283
          %s1285 = sand.u32 %s148, 1
          %s1286 = scalar_lea.vmem [#allocation2], %s1285
          %1287 = dma.done %s1284, 16
        $region52: #{tpu_custom_call.1} parent=47 // pred_fallthru
          _
      $region48: #{tpu_custom_call.1} parent=5 // pred_fallthru
        _
    $region6: #{tpu_custom_call.1} parent=1 // loop_footer
      %s18 = sadd.s32 1, %s14
    $region7: #{tpu_custom_call.1} parent=1 // loop_footer_branch
      %13 = sbr.rel target = $region3
    $region8: #{tpu_custom_call.1} parent=1 // loop_exit
      _
    %1288 = vsyncpa [#allocation3], 1
    %s1289 = scalar_lea.sflag [#allocation3], 1
    %1290 = vsyncpa %s1289, 1

</llo_original>
